<compile_context>
chip_gen: v7x
topology: tpu7x:2x2x1
jax: 0.10.0
libtpu: 0.0.40
codegen_flags: <defaults>
</compile_context>

<pallas_src>
import functools

import jax
import jax.numpy as jnp
from jax import lax
from jax.experimental import pallas as pl
from jax.experimental.pallas import tpu as pltpu

# ---- MADMIL configuration ----
L_IN      = 1024              # size[0]
L_MID     = 512               # size[1]
N_HEADS   = 2                 # n
STEP      = L_MID // N_HEADS  # 256
DIM       = STEP // 2         # 128  (head_size='small')
N_CLASSES = 2

MAX_TILE_N = 1024             # safe for v7x's 64 MiB VMEM; raise to 2048 on v5e/v6e
VMEM_LIMIT_BYTES = 48 * 1024 * 1024
NEG_INF = -1e30


def _madmil_kernel(n_heads, step, dim,
                   n_ref,                               # SMEM scalar prefetch
                   h_ref, w1_ref, b1_ref,
                   wab_ref, bab_ref, wsel_ref, bc_ref,
                   wcls_ref, bcls_ref,
                   logits_ref, a_raw_ref,
                   m_sc, l_sc, acc_sc):
    """One grid step processes a (tile_n, 1024) block of instances.

    Inputs (VMEM):
      h_ref    (tile_n, 1024) f32/bf16   w1_ref (1024, 512) bf16  b1_ref (1, 512) f32
      wab_ref  (H, 256, 256)  bf16       bab_ref (H, 256) f32
      wsel_ref (H, H*128)     bf16 (block-diag wc rows)   bc_ref (H, 1) f32
      wcls_ref (512, 2) f32              bcls_ref (1, 2) f32
    Outputs:
      logits_ref (1, 2) f32  (resident accumulator, written on last tile)
      a_raw_ref  (H, tile_n) f32  (lane-dense raw attention scores)
    Scratch:
      m_sc (H,1) running max, l_sc (H,1) running denom, acc_sc (H, STEP) pooled.
    """
    i = pl.program_id(0)
    tile_n = h_ref.shape[0]
    n_valid = n_ref[0]

    @pl.when(i == 0)
    def _init():
        m_sc[...] = jnp.full_like(m_sc, NEG_INF)
        l_sc[...] = jnp.zeros_like(l_sc)
        acc_sc[...] = jnp.zeros_like(acc_sc)

    # --- net_general: Linear(1024 -> 512) + ReLU (bf16 MXU, f32 accumulate) ---
    h_bf = h_ref[...].astype(jnp.bfloat16)                       # in-VMEM cast
    h1 = jnp.maximum(
        jnp.dot(h_bf, w1_ref[...], preferred_element_type=jnp.float32)
        + b1_ref[...],
        0.0)                                                     # (tile_n, 512) f32

    # Rows past n_valid of a ragged last block hold unspecified data; zero them
    # with a select (NaN/Inf-safe) so they cannot contaminate scores or pooling.
    # For full tiles this is an exact no-op (select of identical values).
    row = i * tile_n + lax.broadcasted_iota(jnp.int32, (tile_n, 1), 0)
    h1_bf16 = jnp.where(row < n_valid, h1.astype(jnp.bfloat16), 0.0)

    # --- Attn_Net_Gated heads: fused [tanh | sigmoid] (256,256) matmul / head ---
    ab = []
    for k in range(n_heads):                                     # static unroll (H=2)
        hk = h1_bf16[:, k * step:(k + 1) * step]                 # (tile_n, 256)
        g = (jnp.dot(hk, wab_ref[k], preferred_element_type=jnp.float32)
             + bab_ref[k:k + 1, :])                              # (tile_n, 2*dim) f32
        ab.append((jnp.tanh(g[:, :dim]) * jax.nn.sigmoid(g[:, dim:]))
                  .astype(jnp.bfloat16))                         # (tile_n, dim)
    ab_cat = jnp.concatenate(ab, axis=1)                         # (tile_n, H*dim) bf16

    # --- lane-major scores, straight off the MXU: 'hd,nd->hn' NT matmul ------
    scores = lax.dot_general(
        wsel_ref[...], ab_cat, (((1,), (1,)), ((), ())),
        preferred_element_type=jnp.float32) + bc_ref[...]        # (H, tile_n) f32

    # Mask columns past n_valid (cheap: ~8 packed vregs in this layout).
    col = i * tile_n + lax.broadcasted_iota(jnp.int32, scores.shape, 1)
    scores = jnp.where(col < n_valid, scores, NEG_INF)

    # Lane-dense raw-score store; Pallas masks out-of-range lanes of the last block.
    a_raw_ref[...] = scores

    # --- online softmax over the instance (lane) axis ------------------------
    tile_max = jnp.max(scores, axis=1, keepdims=True)            # (H, 1)
    m_new = jnp.maximum(m_sc[...], tile_max)
    alpha = jnp.exp(m_sc[...] - m_new)                           # (H, 1)
    e = jnp.exp(scores - m_new)                                  # (H, tile_n); pads -> 0
    l_sc[...] = alpha * l_sc[...] + jnp.sum(e, axis=1, keepdims=True)
    m_sc[...] = m_new

    # --- unnormalized pooling: each head only needs its own 256-column slice --
    e_bf = e.astype(jnp.bfloat16)
    pooled = jnp.concatenate(
        [jnp.dot(e_bf[k:k + 1, :], h1_bf16[:, k * step:(k + 1) * step],
                 preferred_element_type=jnp.float32)
         for k in range(n_heads)], axis=0)                       # (H, STEP) f32
    acc_sc[...] = acc_sc[...] * alpha + pooled

    # --- finalize on last tile: normalize, assemble M (1, 512), classify -----
    @pl.when(i == pl.num_programs(0) - 1)
    def _finalize():
        inv_l = 1.0 / l_sc[...]                                  # (H, 1)
        m_vec = jnp.concatenate(
            [acc_sc[k:k + 1, :] * inv_l[k:k + 1, :] for k in range(n_heads)],
            axis=1)                                              # (1, 512)
        logits_ref[...] = (jnp.dot(m_vec, wcls_ref[...],
                                   preferred_element_type=jnp.float32)
                           + bcls_ref[...])


def init_params(key):
    ks = jax.random.split(key, 8)
    s = 0.02
    W1   = (jax.random.normal(ks[0], (L_IN, L_MID)) * s).astype(jnp.float32)
    b1   = jnp.zeros((1, L_MID), jnp.float32)
    Wa   = (jax.random.normal(ks[1], (N_HEADS, STEP, DIM)) * s).astype(jnp.float32)
    ba   = jnp.zeros((N_HEADS, DIM), jnp.float32)
    Wb   = (jax.random.normal(ks[2], (N_HEADS, STEP, DIM)) * s).astype(jnp.float32)
    bb   = jnp.zeros((N_HEADS, DIM), jnp.float32)
    wc   = (jax.random.normal(ks[3], (N_HEADS, DIM)) * s).astype(jnp.float32)
    bc   = jnp.zeros((1, N_HEADS), jnp.float32)
    Wcls = (jax.random.normal(ks[4], (L_MID, N_CLASSES)) * s).astype(jnp.float32)
    bcls = jnp.zeros((1, N_CLASSES), jnp.float32)
    return (W1, b1, Wa, ba, Wb, bb, wc, bc, Wcls, bcls)


def madmil_forward(h, params, *, n_valid=None, max_tile_n=MAX_TILE_N):
    """h: (N, 1024) f32 or bf16.  n_valid: true bag size if h was padded upstream
    to a bucketed length (avoids one Mosaic compile per distinct bag size)."""
    N = h.shape[0]
    if n_valid is None:
        n_valid = N
    assert 0 < n_valid <= N
    W1, b1, Wa, ba, Wb, bb, wc, bc, Wcls, bcls = params

    # Weight prep (all resident in VMEM across the grid).
    W1b = W1.astype(jnp.bfloat16)
    Wab = jnp.concatenate([Wa, Wb], axis=-1).astype(jnp.bfloat16)   # (H, 256, 256)
    bab = jnp.concatenate([ba, bb], axis=-1).astype(jnp.float32)    # (H, 256)
    # Block-diagonal score selector: Wsel[k, k*DIM:(k+1)*DIM] = wc[k], else 0.
    eye = jnp.eye(N_HEADS, dtype=wc.dtype)
    Wsel = (eye[:, :, None] * wc[None, :, :]).reshape(N_HEADS, N_HEADS * DIM)
    Wsel = Wsel.astype(jnp.bfloat16)
    bc_col = bc.reshape(N_HEADS, 1).astype(jnp.float32)

    # Tile selection: single full-array block for small bags (no (8,128) issue
    # when block == full dims); otherwise a 128-multiple tile with a ragged,
    # in-kernel-masked last block.
    if N <= max_tile_n:
        tile_n = N
    else:
        tile_n = max(128, (max_tile_n // 128) * 128)
    grid = (pl.cdiv(N, tile_n),)

    kernel = functools.partial(_madmil_kernel, N_HEADS, STEP, DIM)

    grid_spec = pltpu.PrefetchScalarGridSpec(
        num_scalar_prefetch=1,      # n_valid lives in SMEM
        grid=grid,
        in_specs=[
            pl.BlockSpec((tile_n, L_IN), lambda i, n: (i, 0)),               # h (streamed)
            pl.BlockSpec((L_IN, L_MID), lambda i, n: (0, 0)),                # W1
            pl.BlockSpec((1, L_MID), lambda i, n: (0, 0)),                   # b1
            pl.BlockSpec((N_HEADS, STEP, 2 * DIM), lambda i, n: (0, 0, 0)),  # Wab
            pl.BlockSpec((N_HEADS, 2 * DIM), lambda i, n: (0, 0)),           # bab
            pl.BlockSpec((N_HEADS, N_HEADS * DIM), lambda i, n: (0, 0)),     # Wsel
            pl.BlockSpec((N_HEADS, 1), lambda i, n: (0, 0)),                 # bc
            pl.BlockSpec((L_MID, N_CLASSES), lambda i, n: (0, 0)),           # Wcls
            pl.BlockSpec((1, N_CLASSES), lambda i, n: (0, 0)),               # bcls
        ],
        out_specs=[
            pl.BlockSpec((1, N_CLASSES), lambda i, n: (0, 0)),               # logits (acc)
            pl.BlockSpec((N_HEADS, tile_n), lambda i, n: (0, i)),            # raw scores
        ],
        scratch_shapes=[
            pltpu.VMEM((N_HEADS, 1), jnp.float32),        # running max
            pltpu.VMEM((N_HEADS, 1), jnp.float32),        # running denom
            pltpu.VMEM((N_HEADS, STEP), jnp.float32),     # per-head pooled feats
        ],
    )

    h_bytes = h.size * h.dtype.itemsize
    weight_bytes = (W1b.size * 2 + b1.size * 4 + Wab.size * 2 + bab.size * 4 +
                    Wsel.size * 2 + bc_col.size * 4 + Wcls.size * 4 + bcls.size * 4)
    cost = pl.CostEstimate(
        flops=(2 * N * L_IN * L_MID
               + 2 * N * N_HEADS * STEP * (2 * DIM)
               + 2 * N * N_HEADS * (N_HEADS * DIM)
               + 2 * N * N_HEADS * STEP
               + 2 * L_MID * N_CLASSES),
        transcendentals=N * N_HEADS * (2 * DIM + 1),
        bytes_accessed=h_bytes + weight_bytes + N * N_HEADS * 4 + N_CLASSES * 4,
    )

    logits, a_raw = pl.pallas_call(
        kernel,
        out_shape=(
            jax.ShapeDtypeStruct((1, N_CLASSES), jnp.float32),
            jax.ShapeDtypeStruct((N_HEADS, N), jnp.float32),
        ),
        grid_spec=grid_spec,
        compiler_params=pltpu.CompilerParams(
            dimension_semantics=("arbitrary",),      # softmax over N is a reduction
            vmem_limit_bytes=VMEM_LIMIT_BYTES,
        ),
        cost_estimate=cost,
    )(jnp.array([n_valid], jnp.int32), h, W1b, b1, Wab, bab, Wsel, bc_col,
      Wcls, bcls)

    a_raw = a_raw[:, :n_valid]                                # (H, n_valid)
    A_raw = a_raw[None, :, :]                                 # (1, H, N) — torch layout
    A = jax.nn.softmax(a_raw, axis=1)[None, :, :]             # exact per-head softmax
    Y_prob = jax.nn.softmax(logits, axis=1)
    Y_hat = jnp.argmax(logits, axis=1).reshape(1, 1)          # torch.topk(logits,1)[1]
    return logits, Y_prob, Y_hat, A_raw, A


def madmil_reference(h, params):
    """Pure-JAX reference mirroring the PyTorch forward, for verification."""
    W1, b1, Wa, ba, Wb, bb, wc, bc, Wcls, bcls = params
    h1 = jax.nn.relu(h @ W1 + b1)
    hr = h1.reshape(-1, N_HEADS, STEP)
    scores = []
    for k in range(N_HEADS):
        hk = hr[:, k, :]
        a = jnp.tanh(hk @ Wa[k] + ba[k])
        b = jax.nn.sigmoid(hk @ Wb[k] + bb[k])
        scores.append((a * b) @ wc[k][:, None] + bc[0, k])    # (N, 1)
    A = jnp.stack(scores, axis=1)                             # (N, H, 1)
    A = jnp.transpose(A, (2, 1, 0))                           # (1, H, N)
    A_raw = A
    A = jax.nn.softmax(A, axis=-1)
    M = jnp.einsum('ijk,kjl->ijl', A, hr).reshape(1, L_MID)
    logits = M @ Wcls + bcls
    return logits, A_raw, A


def _check(h, params, outs):
    logits, Y_prob, Y_hat, A_raw, A = outs
    N = h.shape[0]
    ref_logits, ref_A_raw, ref_A = madmil_reference(h, params)
    assert logits.shape == (1, N_CLASSES)
    assert Y_prob.shape == (1, N_CLASSES)
    assert Y_hat.shape == (1, 1)
    assert A_raw.shape == (1, N_HEADS, N) and A.shape == (1, N_HEADS, N)
    # bf16 MXU inputs (f32 accumulation) -> loosened tolerances vs f32 reference.
    assert jnp.allclose(logits, ref_logits, atol=2e-2, rtol=2e-2)
    assert jnp.allclose(A_raw, ref_A_raw, atol=2e-2, rtol=2e-2)
    assert jnp.allclose(A, ref_A, atol=5e-3, rtol=5e-3)


if __name__ == "__main__":
    key = jax.random.PRNGKey(0)
    kh1, kh2, kp = jax.random.split(key, 3)
    params = init_params(kp)

    # Small bag (single full-array block).
    N1 = 16
    h_small = jax.random.normal(kh1, (N1, L_IN), jnp.float32)
    out_small = madmil_forward(h_small, params)
    jax.block_until_ready(out_small)
    _check(h_small, params, out_small)

    # Multi-tile bag with a ragged last block (online softmax + masking + NaN guard).
    N2 = 200
    h_big = jax.random.normal(kh2, (N2, L_IN), jnp.float32)
    out_big = madmil_forward(h_big, params, max_tile_n=128)
    jax.block_until_ready(out_big)
    _check(h_big, params, out_big)

    print("KERNEL_OK")
</pallas_src>

<mosaic_0001>
module attributes {stable_mosaic.version = 11 : i64} {
  func.func @_madmil_kernel(%arg0: i32, %arg1: memref<1xi32, #tpu.memory_space<smem>>, %arg2: memref<16x1024xf32, #tpu.memory_space<vmem>>, %arg3: memref<1024x512xbf16, #tpu.memory_space<vmem>>, %arg4: memref<1x512xf32, #tpu.memory_space<vmem>>, %arg5: memref<2x256x256xbf16, #tpu.memory_space<vmem>>, %arg6: memref<2x256xf32, #tpu.memory_space<vmem>>, %arg7: memref<2x256xbf16, #tpu.memory_space<vmem>>, %arg8: memref<2x1xf32, #tpu.memory_space<vmem>>, %arg9: memref<512x2xf32, #tpu.memory_space<vmem>>, %arg10: memref<1x2xf32, #tpu.memory_space<vmem>>, %arg11: memref<1x2xf32, #tpu.memory_space<vmem>>, %arg12: memref<2x16xf32, #tpu.memory_space<vmem>>, %arg13: memref<2x1xf32, #tpu.memory_space<vmem>>, %arg14: memref<2x1xf32, #tpu.memory_space<vmem>>, %arg15: memref<2x256xf32, #tpu.memory_space<vmem>>) attributes {dimension_semantics = [#tpu.dimension_semantics<arbitrary>], iteration_bounds = array<i64: 1>, scalar_prefetch = 1 : i64, scratch_operands = 3 : i64, tpu.core_type = #tpu.core_type<tc>, window_params = [{transform_indices = @transform_0, window_bounds = array<i64: 16, 1024>}, {pipeline_mode = #tpu.pipeline_mode<synchronous>, transform_indices = @transform_1, window_bounds = array<i64: 1024, 512>}, {pipeline_mode = #tpu.pipeline_mode<synchronous>, transform_indices = @transform_2, window_bounds = array<i64: 1, 512>}, {pipeline_mode = #tpu.pipeline_mode<synchronous>, transform_indices = @transform_3, window_bounds = array<i64: 2, 256, 256>}, {pipeline_mode = #tpu.pipeline_mode<synchronous>, transform_indices = @transform_4, window_bounds = array<i64: 2, 256>}, {pipeline_mode = #tpu.pipeline_mode<synchronous>, transform_indices = @transform_5, window_bounds = array<i64: 2, 256>}, {pipeline_mode = #tpu.pipeline_mode<synchronous>, transform_indices = @transform_6, window_bounds = array<i64: 2, 1>}, {pipeline_mode = #tpu.pipeline_mode<synchronous>, transform_indices = @transform_7, window_bounds = array<i64: 512, 2>}, {pipeline_mode = #tpu.pipeline_mode<synchronous>, transform_indices = @transform_8, window_bounds = array<i64: 1, 2>}, {pipeline_mode = #tpu.pipeline_mode<synchronous>, transform_indices = @transform_9, window_bounds = array<i64: 1, 2>}, {transform_indices = @transform_10, window_bounds = array<i64: 2, 16>}]} {
    %c0 = arith.constant 0 : index
    %0 = memref.load %arg1[%c0] : memref<1xi32, #tpu.memory_space<smem>>
    %c0_i32 = arith.constant 0 : i32
    %1 = arith.cmpi eq, %arg0, %c0_i32 : i32
    %2 = arith.extui %1 : i1 to i32
    %c0_i32_0 = arith.constant 0 : i32
    %3 = arith.cmpi ne, %2, %c0_i32_0 : i32
    scf.if %3 {
      %cst_51 = arith.constant -1.000000e+30 : f32
      %107 = vector.broadcast %cst_51 : f32 to vector<2x1xf32>
      %c0_52 = arith.constant 0 : index
      %c0_53 = arith.constant 0 : index
      %108 = vector.load %arg13[%c0_52, %c0_53] : memref<2x1xf32, #tpu.memory_space<vmem>>, vector<2x1xf32>
      tpu.vector_store %arg13[%c0_52, %c0_53], %107 {strides = array<i32>} : memref<2x1xf32, #tpu.memory_space<vmem>>, vector<2x1xf32>,
      %cst_54 = arith.constant 0.000000e+00 : f32
      %109 = vector.broadcast %cst_54 : f32 to vector<2x1xf32>
      %c0_55 = arith.constant 0 : index
      %c0_56 = arith.constant 0 : index
      %110 = vector.load %arg14[%c0_55, %c0_56] : memref<2x1xf32, #tpu.memory_space<vmem>>, vector<2x1xf32>
      tpu.vector_store %arg14[%c0_55, %c0_56], %109 {strides = array<i32>} : memref<2x1xf32, #tpu.memory_space<vmem>>, vector<2x1xf32>,
      %cst_57 = arith.constant 0.000000e+00 : f32
      %111 = vector.broadcast %cst_57 : f32 to vector<2x256xf32>
      %c0_58 = arith.constant 0 : index
      %c0_59 = arith.constant 0 : index
      %112 = vector.load %arg15[%c0_58, %c0_59] : memref<2x256xf32, #tpu.memory_space<vmem>>, vector<2x256xf32>
      tpu.vector_store %arg15[%c0_58, %c0_59], %111 {strides = array<i32>} : memref<2x256xf32, #tpu.memory_space<vmem>>, vector<2x256xf32>,
    } else {
    }
    %c0_1 = arith.constant 0 : index
    %c0_2 = arith.constant 0 : index
    %4 = vector.load %arg2[%c0_1, %c0_2] : memref<16x1024xf32, #tpu.memory_space<vmem>>, vector<16x1024xf32>
    %5 = arith.truncf %4 : vector<16x1024xf32> to vector<16x1024xbf16>
    %c0_3 = arith.constant 0 : index
    %c0_4 = arith.constant 0 : index
    %6 = vector.load %arg3[%c0_3, %c0_4] : memref<1024x512xbf16, #tpu.memory_space<vmem>>, vector<1024x512xbf16>
    %cst = arith.constant dense<0.000000e+00> : vector<16x512xf32>
    %7 = tpu.matmul %5, %6, %cst {dimension_numbers = #tpu.dot_dimension_numbers<[1], [0], [0], [1], [0, 0, 1, 1], [], []>} : vector<16x1024xbf16>, vector<1024x512xbf16>, vector<16x512xf32> -> vector<16x512xf32>
    %c0_5 = arith.constant 0 : index
    %c0_6 = arith.constant 0 : index
    %8 = vector.load %arg4[%c0_5, %c0_6] : memref<1x512xf32, #tpu.memory_space<vmem>>, vector<1x512xf32>
    %9 = vector.broadcast %8 : vector<1x512xf32> to vector<16x512xf32>
    %10 = arith.addf %7, %9 : vector<16x512xf32>
    %cst_7 = arith.constant 0.000000e+00 : f32
    %11 = vector.broadcast %cst_7 : f32 to vector<16x512xf32>
    %12 = arith.maximumf %10, %11 : vector<16x512xf32>
    %c16_i32 = arith.constant 16 : i32
    %13 = arith.muli %arg0, %c16_i32 : i32
    %14 = tpu.iota {dimensions = array<i32: 0>} : vector<16x1xi32>
    %15 = vector.broadcast %13 : i32 to vector<16x1xi32>
    %16 = arith.addi %15, %14 : vector<16x1xi32>
    %17 = vector.broadcast %0 : i32 to vector<16x1xi32>
    %18 = arith.cmpi slt, %16, %17 : vector<16x1xi32>
    %19 = arith.truncf %12 : vector<16x512xf32> to vector<16x512xbf16>
    %cst_8 = arith.constant 0.000000e+00 : f32
    %20 = arith.truncf %cst_8 : f32 to bf16
    %21 = vector.shape_cast %18 : vector<16x1xi1> to vector<16x1xi1>
    %22 = vector.broadcast %21 : vector<16x1xi1> to vector<16x512xi1>
    %23 = vector.broadcast %20 : bf16 to vector<16x512xbf16>
    %24 = arith.select %22, %19, %23 : vector<16x512xi1>, vector<16x512xbf16>
    %25 = vector.extract_strided_slice %24 {offsets = [0, 0], sizes = [16, 256], strides = [1, 1]} : vector<16x512xbf16> to vector<16x256xbf16>
    %c0_9 = arith.constant 0 : index
    %c0_10 = arith.constant 0 : index
    %c0_11 = arith.constant 0 : index
    %26 = vector.load %arg5[%c0_9, %c0_10, %c0_11] : memref<2x256x256xbf16, #tpu.memory_space<vmem>>, vector<1x256x256xbf16>
    %27 = vector.shape_cast %26 : vector<1x256x256xbf16> to vector<256x256xbf16>
    %cst_12 = arith.constant dense<0.000000e+00> : vector<16x256xf32>
    %28 = tpu.matmul %25, %27, %cst_12 {dimension_numbers = #tpu.dot_dimension_numbers<[1], [0], [0], [1], [0, 0, 1, 1], [], []>} : vector<16x256xbf16>, vector<256x256xbf16>, vector<16x256xf32> -> vector<16x256xf32>
    %c0_13 = arith.constant 0 : index
    %c0_14 = arith.constant 0 : index
    %29 = vector.load %arg6[%c0_13, %c0_14] : memref<2x256xf32, #tpu.memory_space<vmem>>, vector<1x256xf32>
    %30 = vector.broadcast %29 : vector<1x256xf32> to vector<16x256xf32>
    %31 = arith.addf %28, %30 : vector<16x256xf32>
    %32 = vector.extract_strided_slice %31 {offsets = [0, 0], sizes = [16, 128], strides = [1, 1]} : vector<16x256xf32> to vector<16x128xf32>
    %33 = math.tanh %32 : vector<16x128xf32>
    %34 = vector.extract_strided_slice %31 {offsets = [0, 128], sizes = [16, 128], strides = [1, 1]} : vector<16x256xf32> to vector<16x128xf32>
    %35 = arith.negf %34 : vector<16x128xf32>
    %36 = math.exp %35 : vector<16x128xf32>
    %cst_15 = arith.constant 1.000000e+00 : f32
    %37 = vector.broadcast %cst_15 : f32 to vector<16x128xf32>
    %38 = arith.addf %37, %36 : vector<16x128xf32>
    %39 = arith.divf %37, %38 : vector<16x128xf32>
    %40 = arith.mulf %33, %39 : vector<16x128xf32>
    %41 = arith.truncf %40 : vector<16x128xf32> to vector<16x128xbf16>
    %42 = vector.extract_strided_slice %24 {offsets = [0, 256], sizes = [16, 256], strides = [1, 1]} : vector<16x512xbf16> to vector<16x256xbf16>
    %c1 = arith.constant 1 : index
    %c0_16 = arith.constant 0 : index
    %c0_17 = arith.constant 0 : index
    %43 = vector.load %arg5[%c1, %c0_16, %c0_17] : memref<2x256x256xbf16, #tpu.memory_space<vmem>>, vector<1x256x256xbf16>
    %44 = vector.shape_cast %43 : vector<1x256x256xbf16> to vector<256x256xbf16>
    %cst_18 = arith.constant dense<0.000000e+00> : vector<16x256xf32>
    %45 = tpu.matmul %42, %44, %cst_18 {dimension_numbers = #tpu.dot_dimension_numbers<[1], [0], [0], [1], [0, 0, 1, 1], [], []>} : vector<16x256xbf16>, vector<256x256xbf16>, vector<16x256xf32> -> vector<16x256xf32>
    %c1_19 = arith.constant 1 : index
    %c0_20 = arith.constant 0 : index
    %46 = vector.load %arg6[%c1_19, %c0_20] : memref<2x256xf32, #tpu.memory_space<vmem>>, vector<1x256xf32>
    %47 = vector.broadcast %46 : vector<1x256xf32> to vector<16x256xf32>
    %48 = arith.addf %45, %47 : vector<16x256xf32>
    %49 = vector.extract_strided_slice %48 {offsets = [0, 0], sizes = [16, 128], strides = [1, 1]} : vector<16x256xf32> to vector<16x128xf32>
    %50 = math.tanh %49 : vector<16x128xf32>
    %51 = vector.extract_strided_slice %48 {offsets = [0, 128], sizes = [16, 128], strides = [1, 1]} : vector<16x256xf32> to vector<16x128xf32>
    %52 = arith.negf %51 : vector<16x128xf32>
    %53 = math.exp %52 : vector<16x128xf32>
    %cst_21 = arith.constant 1.000000e+00 : f32
    %54 = vector.broadcast %cst_21 : f32 to vector<16x128xf32>
    %55 = arith.addf %54, %53 : vector<16x128xf32>
    %56 = arith.divf %54, %55 : vector<16x128xf32>
    %57 = arith.mulf %50, %56 : vector<16x128xf32>
    %58 = arith.truncf %57 : vector<16x128xf32> to vector<16x128xbf16>
    %59 = tpu.concatenate %41, %58 in 1 : vector<16x128xbf16>, vector<16x128xbf16> -> vector<16x256xbf16>
    %c0_22 = arith.constant 0 : index
    %c0_23 = arith.constant 0 : index
    %60 = vector.load %arg7[%c0_22, %c0_23] : memref<2x256xbf16, #tpu.memory_space<vmem>>, vector<2x256xbf16>
    %cst_24 = arith.constant dense<0.000000e+00> : vector<2x16xf32>
    %61 = tpu.matmul %60, %59, %cst_24 {dimension_numbers = #tpu.dot_dimension_numbers<[1], [1], [0], [0], [0, 0, 1, 0], [], []>} : vector<2x256xbf16>, vector<16x256xbf16>, vector<2x16xf32> -> vector<2x16xf32>
    %c0_25 = arith.constant 0 : index
    %c0_26 = arith.constant 0 : index
    %62 = vector.load %arg8[%c0_25, %c0_26] : memref<2x1xf32, #tpu.memory_space<vmem>>, vector<2x1xf32>
    %63 = vector.broadcast %62 : vector<2x1xf32> to vector<2x16xf32>
    %64 = arith.addf %61, %63 : vector<2x16xf32>
    %c16_i32_27 = arith.constant 16 : i32
    %65 = arith.muli %arg0, %c16_i32_27 : i32
    %66 = tpu.iota {dimensions = array<i32: 1>} : vector<2x16xi32>
    %67 = vector.broadcast %65 : i32 to vector<2x16xi32>
    %68 = arith.addi %67, %66 : vector<2x16xi32>
    %69 = vector.broadcast %0 : i32 to vector<2x16xi32>
    %70 = arith.cmpi slt, %68, %69 : vector<2x16xi32>
    %cst_28 = arith.constant -1.000000e+30 : f32
    %71 = vector.broadcast %cst_28 : f32 to vector<2x16xf32>
    %72 = arith.select %70, %64, %71 : vector<2x16xi1>, vector<2x16xf32>
    %c0_29 = arith.constant 0 : index
    %c0_30 = arith.constant 0 : index
    %73 = vector.load %arg12[%c0_29, %c0_30] : memref<2x16xf32, #tpu.memory_space<vmem>>, vector<2x16xf32>
    tpu.vector_store %arg12[%c0_29, %c0_30], %72 {strides = array<i32>} : memref<2x16xf32, #tpu.memory_space<vmem>>, vector<2x16xf32>,
    %cst_31 = arith.constant dense<0xFF800000> : vector<2xf32>
    %74 = vector.multi_reduction <maximumf>, %72, %cst_31 [1] : vector<2x16xf32> to vector<2xf32>
    %75 = vector.shape_cast %74 : vector<2xf32> to vector<2x1xf32>
    %c0_32 = arith.constant 0 : index
    %c0_33 = arith.constant 0 : index
    %76 = vector.load %arg13[%c0_32, %c0_33] : memref<2x1xf32, #tpu.memory_space<vmem>>, vector<2x1xf32>
    %77 = arith.maximumf %76, %75 : vector<2x1xf32>
    %c0_34 = arith.constant 0 : index
    %c0_35 = arith.constant 0 : index
    %78 = vector.load %arg13[%c0_34, %c0_35] : memref<2x1xf32, #tpu.memory_space<vmem>>, vector<2x1xf32>
    %79 = arith.subf %78, %77 : vector<2x1xf32>
    %80 = math.exp %79 : vector<2x1xf32>
    %81 = vector.broadcast %77 : vector<2x1xf32> to vector<2x16xf32>
    %82 = arith.subf %72, %81 : vector<2x16xf32>
    %83 = math.exp %82 : vector<2x16xf32>
    %c0_36 = arith.constant 0 : index
    %c0_37 = arith.constant 0 : index
    %84 = vector.load %arg14[%c0_36, %c0_37] : memref<2x1xf32, #tpu.memory_space<vmem>>, vector<2x1xf32>
    %85 = arith.mulf %80, %84 : vector<2x1xf32>
    %cst_38 = arith.constant dense<0.000000e+00> : vector<2xf32>
    %86 = vector.multi_reduction <add>, %83, %cst_38 [1] : vector<2x16xf32> to vector<2xf32>
    %87 = vector.shape_cast %86 : vector<2xf32> to vector<2x1xf32>
    %88 = arith.addf %85, %87 : vector<2x1xf32>
    %c0_39 = arith.constant 0 : index
    %c0_40 = arith.constant 0 : index
    %89 = vector.load %arg14[%c0_39, %c0_40] : memref<2x1xf32, #tpu.memory_space<vmem>>, vector<2x1xf32>
    tpu.vector_store %arg14[%c0_39, %c0_40], %88 {strides = array<i32>} : memref<2x1xf32, #tpu.memory_space<vmem>>, vector<2x1xf32>,
    %c0_41 = arith.constant 0 : index
    %c0_42 = arith.constant 0 : index
    %90 = vector.load %arg13[%c0_41, %c0_42] : memref<2x1xf32, #tpu.memory_space<vmem>>, vector<2x1xf32>
    tpu.vector_store %arg13[%c0_41, %c0_42], %77 {strides = array<i32>} : memref<2x1xf32, #tpu.memory_space<vmem>>, vector<2x1xf32>,
    %91 = arith.truncf %83 : vector<2x16xf32> to vector<2x16xbf16>
    %92 = vector.extract_strided_slice %91 {offsets = [0, 0], sizes = [1, 16], strides = [1, 1]} : vector<2x16xbf16> to vector<1x16xbf16>
    %93 = vector.extract_strided_slice %24 {offsets = [0, 0], sizes = [16, 256], strides = [1, 1]} : vector<16x512xbf16> to vector<16x256xbf16>
    %cst_43 = arith.constant dense<0.000000e+00> : vector<1x256xf32>
    %94 = tpu.matmul %92, %93, %cst_43 {dimension_numbers = #tpu.dot_dimension_numbers<[1], [0], [0], [1], [0, 0, 1, 1], [], []>} : vector<1x16xbf16>, vector<16x256xbf16>, vector<1x256xf32> -> vector<1x256xf32>
    %95 = vector.extract_strided_slice %91 {offsets = [1, 0], sizes = [1, 16], strides = [1, 1]} : vector<2x16xbf16> to vector<1x16xbf16>
    %96 = vector.extract_strided_slice %24 {offsets = [0, 256], sizes = [16, 256], strides = [1, 1]} : vector<16x512xbf16> to vector<16x256xbf16>
    %cst_44 = arith.constant dense<0.000000e+00> : vector<1x256xf32>
    %97 = tpu.matmul %95, %96, %cst_44 {dimension_numbers = #tpu.dot_dimension_numbers<[1], [0], [0], [1], [0, 0, 1, 1], [], []>} : vector<1x16xbf16>, vector<16x256xbf16>, vector<1x256xf32> -> vector<1x256xf32>
    %98 = tpu.concatenate %94, %97 in 0 : vector<1x256xf32>, vector<1x256xf32> -> vector<2x256xf32>
    %c0_45 = arith.constant 0 : index
    %c0_46 = arith.constant 0 : index
    %99 = vector.load %arg15[%c0_45, %c0_46] : memref<2x256xf32, #tpu.memory_space<vmem>>, vector<2x256xf32>
    %100 = vector.broadcast %80 : vector<2x1xf32> to vector<2x256xf32>
    %101 = arith.mulf %99, %100 : vector<2x256xf32>
    %102 = arith.addf %101, %98 : vector<2x256xf32>
    %c0_47 = arith.constant 0 : index
    %c0_48 = arith.constant 0 : index
    %103 = vector.load %arg15[%c0_47, %c0_48] : memref<2x256xf32, #tpu.memory_space<vmem>>, vector<2x256xf32>
    tpu.vector_store %arg15[%c0_47, %c0_48], %102 {strides = array<i32>} : memref<2x256xf32, #tpu.memory_space<vmem>>, vector<2x256xf32>,
    %c0_i32_49 = arith.constant 0 : i32
    %104 = arith.cmpi eq, %arg0, %c0_i32_49 : i32
    %105 = arith.extui %104 : i1 to i32
    %c0_i32_50 = arith.constant 0 : i32
    %106 = arith.cmpi ne, %105, %c0_i32_50 : i32
    scf.if %106 {
      %c0_51 = arith.constant 0 : index
      %c0_52 = arith.constant 0 : index
      %107 = vector.load %arg14[%c0_51, %c0_52] : memref<2x1xf32, #tpu.memory_space<vmem>>, vector<2x1xf32>
      %cst_53 = arith.constant 1.000000e+00 : f32
      %108 = vector.broadcast %cst_53 : f32 to vector<2x1xf32>
      %109 = arith.divf %108, %107 : vector<2x1xf32>
      %c0_54 = arith.constant 0 : index
      %c0_55 = arith.constant 0 : index
      %110 = vector.load %arg15[%c0_54, %c0_55] : memref<2x256xf32, #tpu.memory_space<vmem>>, vector<1x256xf32>
      %111 = vector.extract_strided_slice %109 {offsets = [0, 0], sizes = [1, 1], strides = [1, 1]} : vector<2x1xf32> to vector<1x1xf32>
      %112 = vector.broadcast %111 : vector<1x1xf32> to vector<1x256xf32>
      %113 = arith.mulf %110, %112 : vector<1x256xf32>
      %c1_56 = arith.constant 1 : index
      %c0_57 = arith.constant 0 : index
      %114 = vector.load %arg15[%c1_56, %c0_57] : memref<2x256xf32, #tpu.memory_space<vmem>>, vector<1x256xf32>
      %115 = vector.extract_strided_slice %109 {offsets = [1, 0], sizes = [1, 1], strides = [1, 1]} : vector<2x1xf32> to vector<1x1xf32>
      %116 = vector.broadcast %115 : vector<1x1xf32> to vector<1x256xf32>
      %117 = arith.mulf %114, %116 : vector<1x256xf32>
      %118 = tpu.concatenate %113, %117 in 1 : vector<1x256xf32>, vector<1x256xf32> -> vector<1x512xf32>
      %c0_58 = arith.constant 0 : index
      %c0_59 = arith.constant 0 : index
      %119 = vector.load %arg9[%c0_58, %c0_59] : memref<512x2xf32, #tpu.memory_space<vmem>>, vector<512x2xf32>
      %cst_60 = arith.constant dense<0.000000e+00> : vector<1x2xf32>
      %120 = tpu.matmul %118, %119, %cst_60 {dimension_numbers = #tpu.dot_dimension_numbers<[1], [0], [0], [1], [0, 0, 1, 1], [], []>} : vector<1x512xf32>, vector<512x2xf32>, vector<1x2xf32> -> vector<1x2xf32>
      %c0_61 = arith.constant 0 : index
      %c0_62 = arith.constant 0 : index
      %121 = vector.load %arg10[%c0_61, %c0_62] : memref<1x2xf32, #tpu.memory_space<vmem>>, vector<1x2xf32>
      %122 = arith.addf %120, %121 : vector<1x2xf32>
      %c0_63 = arith.constant 0 : index
      %c0_64 = arith.constant 0 : index
      %123 = vector.load %arg11[%c0_63, %c0_64] : memref<1x2xf32, #tpu.memory_space<vmem>>, vector<1x2xf32>
      tpu.vector_store %arg11[%c0_63, %c0_64], %122 {strides = array<i32>} : memref<1x2xf32, #tpu.memory_space<vmem>>, vector<1x2xf32>,
    } else {
    }
    return
  }
  func.func @transform_0(%arg0: i32, %arg1: memref<1xi32, #tpu.memory_space<smem>>) -> (i32, i32) {
    %c0_i32 = arith.constant 0 : i32
    %c0_i32_0 = arith.constant 0 : i32
    return %arg0, %c0_i32 : i32, i32
  }
  func.func @transform_1(%arg0: i32, %arg1: memref<1xi32, #tpu.memory_space<smem>>) -> (i32, i32) {
    %c0_i32 = arith.constant 0 : i32
    %c0_i32_0 = arith.constant 0 : i32
    %c0_i32_1 = arith.constant 0 : i32
    return %c0_i32, %c0_i32_0 : i32, i32
  }
  func.func @transform_2(%arg0: i32, %arg1: memref<1xi32, #tpu.memory_space<smem>>) -> (i32, i32) {
    %c0_i32 = arith.constant 0 : i32
    %c0_i32_0 = arith.constant 0 : i32
    %c0_i32_1 = arith.constant 0 : i32
    return %c0_i32, %c0_i32_0 : i32, i32
  }
  func.func @transform_3(%arg0: i32, %arg1: memref<1xi32, #tpu.memory_space<smem>>) -> (i32, i32, i32) {
    %c0_i32 = arith.constant 0 : i32
    %c0_i32_0 = arith.constant 0 : i32
    %c0_i32_1 = arith.constant 0 : i32
    %c0_i32_2 = arith.constant 0 : i32
    return %c0_i32, %c0_i32_0, %c0_i32_1 : i32, i32, i32
  }
  func.func @transform_4(%arg0: i32, %arg1: memref<1xi32, #tpu.memory_space<smem>>) -> (i32, i32) {
    %c0_i32 = arith.constant 0 : i32
    %c0_i32_0 = arith.constant 0 : i32
    %c0_i32_1 = arith.constant 0 : i32
    return %c0_i32, %c0_i32_0 : i32, i32
  }
  func.func @transform_5(%arg0: i32, %arg1: memref<1xi32, #tpu.memory_space<smem>>) -> (i32, i32) {
    %c0_i32 = arith.constant 0 : i32
    %c0_i32_0 = arith.constant 0 : i32
    %c0_i32_1 = arith.constant 0 : i32
    return %c0_i32, %c0_i32_0 : i32, i32
  }
  func.func @transform_6(%arg0: i32, %arg1: memref<1xi32, #tpu.memory_space<smem>>) -> (i32, i32) {
    %c0_i32 = arith.constant 0 : i32
    %c0_i32_0 = arith.constant 0 : i32
    %c0_i32_1 = arith.constant 0 : i32
    return %c0_i32, %c0_i32_0 : i32, i32
  }
  func.func @transform_7(%arg0: i32, %arg1: memref<1xi32, #tpu.memory_space<smem>>) -> (i32, i32) {
    %c0_i32 = arith.constant 0 : i32
    %c0_i32_0 = arith.constant 0 : i32
    %c0_i32_1 = arith.constant 0 : i32
    return %c0_i32, %c0_i32_0 : i32, i32
  }
  func.func @transform_8(%arg0: i32, %arg1: memref<1xi32, #tpu.memory_space<smem>>) -> (i32, i32) {
    %c0_i32 = arith.constant 0 : i32
    %c0_i32_0 = arith.constant 0 : i32
    %c0_i32_1 = arith.constant 0 : i32
    return %c0_i32, %c0_i32_0 : i32, i32
  }
  func.func @transform_9(%arg0: i32, %arg1: memref<1xi32, #tpu.memory_space<smem>>) -> (i32, i32) {
    %c0_i32 = arith.constant 0 : i32
    %c0_i32_0 = arith.constant 0 : i32
    %c0_i32_1 = arith.constant 0 : i32
    return %c0_i32, %c0_i32_0 : i32, i32
  }
  func.func @transform_10(%arg0: i32, %arg1: memref<1xi32, #tpu.memory_space<smem>>) -> (i32, i32) {
    %c0_i32 = arith.constant 0 : i32
    %c0_i32_0 = arith.constant 0 : i32
    return %c0_i32, %arg0 : i32, i32
  }
}

</mosaic_0001>

<llo_original>
// kernel: tpu_custom_call.1
$region0: #{tpu_custom_call.1}
  #allocation0 [shape = 'u32[]', space=smem, size = 0x4, offset = 0x4, fixed_abs, tag = 'smem constant byte address 0x4 - core index']
  #allocation1 [shape = 'u32[144,128]{1,0:T(1,128)}', space=vmem, size = 0x12000, scoped, tag = 'internal scratch']
  #allocation2 [shape = 'f32[2,1]{1,0:T(2,128)}', space=vmem, size = 0x400, scoped, tag = 'scratch operand']
  #allocation3 [shape = 'f32[2,1]{1,0:T(2,128)}', space=vmem, size = 0x400, scoped, tag = 'scratch operand']
  #allocation4 [shape = 'f32[2,256]{1,0:T(2,128)}', space=vmem, size = 0x800, scoped, tag = 'scratch operand']
  #allocation5 [shape = 's32[1]{0}', space=sflag, size = 0x4, scoped, tag = 'scoped memory for tpu_custom_call.1']
  #allocation6 [shape = 's32[1]{0:T(128)S(6)}', space=smem, size = 0x200, scoped, tag = 'prefetched SMEM operand 0']
  %s0 = inlined_call_operand.<no memory space> [shape: s32[1], index: 0, kind: input, shape index: {}]
  %s1 = inlined_call_operand.hbm [shape: f32[16,1024], index: 1, kind: input, shape index: {}]
  %s2 = inlined_call_operand.hbm [shape: bf16[1024,512], index: 2, kind: input, shape index: {}]
  %s3 = inlined_call_operand.vmem [shape: f32[1,512], index: 3, kind: input, shape index: {}]
  %s4 = inlined_call_operand.vmem [shape: bf16[2,256,256], index: 4, kind: input, shape index: {}]
  %s5 = inlined_call_operand.vmem [shape: f32[2,256], index: 5, kind: input, shape index: {}]
  %s6 = inlined_call_operand.vmem [shape: bf16[2,256], index: 6, kind: input, shape index: {}]
  %s7 = inlined_call_operand.vmem [shape: f32[2,1], index: 7, kind: input, shape index: {}]
  %s8 = inlined_call_operand.vmem [shape: f32[512,2], index: 8, kind: input, shape index: {}]
  %s9 = inlined_call_operand.vmem [shape: f32[1,2], index: 9, kind: input, shape index: {}]
  %s10 = inlined_call_operand.hbm [shape: f32[1,2], index: 10, kind: output, shape index: {0}]
  %s11 = inlined_call_operand.hbm [shape: f32[2,16], index: 11, kind: output, shape index: {1}]
  %12 = xla_tuple %s10, %s11
  %s13 = sld [smem:[#allocation0]]
  $region70: #{tpu_custom_call.1} parent=0
    _
  %s15 = ssub.s32 1, %s13
  %s16 = scalar_select 0, %s15, %s13
  %17 = sst [smem:[#allocation6]] %s0
  $region1: #{tpu_custom_call.1} parent=0
    #allocation7 [shape = 'u8[65536]{0}', space=vmem, size = 0x10000, scoped, tag = 'input window, operand 1, single buffered']
    #allocation8 [shape = 's32[1]{0}', space=sflag, size = 0x4, scoped, tag = 'scoped memory for tpu_custom_call.1']
    #allocation9 [shape = 's32[1]{0}', space=sflag, size = 0x4, scoped, tag = 'scoped memory for tpu_custom_call.1']
    #allocation10 [shape = 'u8[1048576]{0}', space=vmem, size = 0x100000, scoped, tag = 'input window, operand 2, single buffered']
    #allocation11 [shape = 's32[1]{0}', space=sflag, size = 0x4, scoped, tag = 'scoped memory for tpu_custom_call.1']
    #allocation12 [shape = 'u8[512]{0}', space=vmem, size = 0x400, scoped, tag = 'output window, operand 0, single buffered']
    #allocation13 [shape = 'u8[1024]{0}', space=vmem, size = 0x400, scoped, tag = 'output window, operand 1, single buffered']
    #allocation14 [shape = 's32[1]{0}', space=sflag, size = 0x4, scoped, tag = 'scoped memory for tpu_custom_call.1']
    %18 = vsyncpa [#allocation8], 0
    %19 = vsyncpa [#allocation11], 0
    %20 = vsyncpa [#allocation9], 0
    %21 = vsyncpa [#allocation14], 0
    // Predicated region
    $region2: #{tpu_custom_call.1} parent=1 // pred_check
      _
    $region3: #{tpu_custom_call.1} parent=1 // pred_check_branch
      %23 = sbr.rel (0) target = $region5
    $region4: #{tpu_custom_call.1} parent=1 // pred_region
      %s25 = ssub.s32 2048, 2048
      %26 = vsyncadd [#allocation8], %s25
      %s27 = sshll.u32 [#allocation7], 4
      %s28 = int_to_ptr.vmem [resolvable:$true] %s27
      %33 = dma.hbm_to_vmem [thread:$0]  %s1, 2048, %s28, [#allocation8], 1024, 1024, 64
    $region5: #{tpu_custom_call.1} parent=1 // pred_fallthru
      _
    // Predicated region
    $region6: #{tpu_custom_call.1} parent=1 // pred_check
      _
    $region7: #{tpu_custom_call.1} parent=1 // pred_check_branch
      %35 = sbr.rel (0) target = $region9
    $region8: #{tpu_custom_call.1} parent=1 // pred_region
      %s37 = ssub.s32 32768, 32768
      %38 = vsyncadd [#allocation11], %s37
      %s39 = sshll.u32 [#allocation10], 4
      %s40 = int_to_ptr.vmem [resolvable:$true] %s39
      %45 = dma.hbm_to_vmem [thread:$0]  %s2, 32768, %s40, [#allocation11], 256, 256, 16
    $region9: #{tpu_custom_call.1} parent=1 // pred_fallthru
      _
    // Predicated region
    $region10: #{tpu_custom_call.1} parent=1 // pred_check
      _
    $region11: #{tpu_custom_call.1} parent=1 // pred_check_branch
      %47 = sbr.rel (0) target = $region13
    $region12: #{tpu_custom_call.1} parent=1 // pred_region
      _
    $region13: #{tpu_custom_call.1} parent=1 // pred_fallthru
      _
    // Predicated region
    $region14: #{tpu_custom_call.1} parent=1 // pred_check
      _
    $region15: #{tpu_custom_call.1} parent=1 // pred_check_branch
      %49 = sbr.rel (0) target = $region17
    $region16: #{tpu_custom_call.1} parent=1 // pred_region
      _
    $region17: #{tpu_custom_call.1} parent=1 // pred_fallthru
      _
    // Predicated region
    $region18: #{tpu_custom_call.1} parent=1 // pred_check
      _
    $region19: #{tpu_custom_call.1} parent=1 // pred_check_branch
      %51 = sbr.rel (0) target = $region21
    $region20: #{tpu_custom_call.1} parent=1 // pred_region
      _
    $region21: #{tpu_custom_call.1} parent=1 // pred_fallthru
      _
    // Predicated region
    $region22: #{tpu_custom_call.1} parent=1 // pred_check
      _
    $region23: #{tpu_custom_call.1} parent=1 // pred_check_branch
      %53 = sbr.rel (0) target = $region25
    $region24: #{tpu_custom_call.1} parent=1 // pred_region
      _
    $region25: #{tpu_custom_call.1} parent=1 // pred_fallthru
      _
    // Predicated region
    $region26: #{tpu_custom_call.1} parent=1 // pred_check
      _
    $region27: #{tpu_custom_call.1} parent=1 // pred_check_branch
      %55 = sbr.rel (0) target = $region29
    $region28: #{tpu_custom_call.1} parent=1 // pred_region
      _
    $region29: #{tpu_custom_call.1} parent=1 // pred_fallthru
      _
    // Predicated region
    $region30: #{tpu_custom_call.1} parent=1 // pred_check
      _
    $region31: #{tpu_custom_call.1} parent=1 // pred_check_branch
      %57 = sbr.rel (0) target = $region33
    $region32: #{tpu_custom_call.1} parent=1 // pred_region
      _
    $region33: #{tpu_custom_call.1} parent=1 // pred_fallthru
      _
    // Predicated region
    $region34: #{tpu_custom_call.1} parent=1 // pred_check
      _
    $region35: #{tpu_custom_call.1} parent=1 // pred_check_branch
      %59 = sbr.rel (0) target = $region37
    $region36: #{tpu_custom_call.1} parent=1 // pred_region
      _
    $region37: #{tpu_custom_call.1} parent=1 // pred_fallthru
      _
    // Predicated region
    $region38: #{tpu_custom_call.1} parent=1 // pred_check
      _
    $region39: #{tpu_custom_call.1} parent=1 // pred_check_branch
      %61 = sbr.rel (0) target = $region41
    $region40: #{tpu_custom_call.1} parent=1 // pred_region
      %62 = dma.done [#allocation8], 2048
    $region41: #{tpu_custom_call.1} parent=1 // pred_fallthru
      _
    // Predicated region
    $region42: #{tpu_custom_call.1} parent=1 // pred_check
      _
    $region43: #{tpu_custom_call.1} parent=1 // pred_check_branch
      %64 = sbr.rel (0) target = $region45
    $region44: #{tpu_custom_call.1} parent=1 // pred_region
      %65 = dma.done [#allocation11], 32768
    $region45: #{tpu_custom_call.1} parent=1 // pred_fallthru
      _
    %s69 = sld [smem:[#allocation6]]
    %p70 = scmp.eq.s32.totalorder 0, 0
    // Predicated region
    $region46: #{tpu_custom_call.1} parent=1 // pred_check
      %p71 = pneg %p70
    $region47: #{tpu_custom_call.1} parent=1 // pred_check_branch
      %73 = sbr.rel (%p71) target = $region49
    $region48: #{tpu_custom_call.1} parent=1 // pred_region
      %vm74 = vcmask 1024
      %75 = vst.msk [vmem:[#allocation2] sm:$0x3] %vm74, -1e+30
      %76 = vst.msk [vmem:[#allocation3] sm:$0x3] %vm74, 0.0
      %77 = vst [vmem:[#allocation4] sm:$0xf] 0.0
    $region49: #{tpu_custom_call.1} parent=1 // pred_fallthru
      _
    %v78 = vld [vmem:[#allocation7] sm:$0xff]
    %v79 = vld [vmem:[#allocation7 + $0x8] sm:$0xff]
    %v80 = vld [vmem:[#allocation7 + $0x10] sm:$0xff]
    %v81 = vld [vmem:[#allocation7 + $0x18] sm:$0xff]
    %v82 = vld [vmem:[#allocation7 + $0x20] sm:$0xff]
    %v83 = vld [vmem:[#allocation7 + $0x28] sm:$0xff]
    %v84 = vld [vmem:[#allocation7 + $0x30] sm:$0xff]
    %v85 = vld [vmem:[#allocation7 + $0x38] sm:$0xff]
    %v86 = vld [vmem:[#allocation7 + $0x40] sm:$0xff]
    %v87 = vld [vmem:[#allocation7 + $0x48] sm:$0xff]
    %v88 = vld [vmem:[#allocation7 + $0x50] sm:$0xff]
    %v89 = vld [vmem:[#allocation7 + $0x58] sm:$0xff]
    %v90 = vld [vmem:[#allocation7 + $0x60] sm:$0xff]
    %v91 = vld [vmem:[#allocation7 + $0x68] sm:$0xff]
    %v92 = vld [vmem:[#allocation7 + $0x70] sm:$0xff]
    %v93 = vld [vmem:[#allocation7 + $0x78] sm:$0xff]
    %v94 = vpack.c.bf16 %v86, %v78
    %v95 = vpack.c.bf16 %v87, %v79
    %v96 = vpack.c.bf16 %v88, %v80
    %v97 = vpack.c.bf16 %v89, %v81
    %v98 = vpack.c.bf16 %v90, %v82
    %v99 = vpack.c.bf16 %v91, %v83
    %v100 = vpack.c.bf16 %v92, %v84
    %v101 = vpack.c.bf16 %v93, %v85
    %v102 = vld [vmem:[#allocation10] sm:$0xff]
    %v103 = vld [vmem:[#allocation10 + $0x8] sm:$0xff]
    %v104 = vld [vmem:[#allocation10 + $0x10] sm:$0xff]
    %v105 = vld [vmem:[#allocation10 + $0x18] sm:$0xff]
    %v106 = vld [vmem:[#allocation10 + $0x20] sm:$0xff]
    %v107 = vld [vmem:[#allocation10 + $0x28] sm:$0xff]
    %v108 = vld [vmem:[#allocation10 + $0x30] sm:$0xff]
    %v109 = vld [vmem:[#allocation10 + $0x38] sm:$0xff]
    %v110 = vld [vmem:[#allocation10 + $0x40] sm:$0xff]
    %v111 = vld [vmem:[#allocation10 + $0x48] sm:$0xff]
    %v112 = vld [vmem:[#allocation10 + $0x50] sm:$0xff]
    %v113 = vld [vmem:[#allocation10 + $0x58] sm:$0xff]
    %v114 = vld [vmem:[#allocation10 + $0x60] sm:$0xff]
    %v115 = vld [vmem:[#allocation10 + $0x68] sm:$0xff]
    %v116 = vld [vmem:[#allocation10 + $0x70] sm:$0xff]
    %v117 = vld [vmem:[#allocation10 + $0x78] sm:$0xff]
    %v118 = vld [vmem:[#allocation10 + $0x80] sm:$0xff]
    %v119 = vld [vmem:[#allocation10 + $0x88] sm:$0xff]
    %v120 = vld [vmem:[#allocation10 + $0x90] sm:$0xff]
    %v121 = vld [vmem:[#allocation10 + $0x98] sm:$0xff]
    %v122 = vld [vmem:[#allocation10 + $0xa0] sm:$0xff]
    %v123 = vld [vmem:[#allocation10 + $0xa8] sm:$0xff]
    %v124 = vld [vmem:[#allocation10 + $0xb0] sm:$0xff]
    %v125 = vld [vmem:[#allocation10 + $0xb8] sm:$0xff]
    %v126 = vld [vmem:[#allocation10 + $0xc0] sm:$0xff]
    %v127 = vld [vmem:[#allocation10 + $0xc8] sm:$0xff]
    %v128 = vld [vmem:[#allocation10 + $0xd0] sm:$0xff]
    %v129 = vld [vmem:[#allocation10 + $0xd8] sm:$0xff]
    %v130 = vld [vmem:[#allocation10 + $0xe0] sm:$0xff]
    %v131 = vld [vmem:[#allocation10 + $0xe8] sm:$0xff]
    %v132 = vld [vmem:[#allocation10 + $0xf0] sm:$0xff]
    %v133 = vld [vmem:[#allocation10 + $0xf8] sm:$0xff]
    %v134 = vld [vmem:[#allocation10 + $0x100] sm:$0xff]
    %v135 = vld [vmem:[#allocation10 + $0x108] sm:$0xff]
    %v136 = vld [vmem:[#allocation10 + $0x110] sm:$0xff]
    %v137 = vld [vmem:[#allocation10 + $0x118] sm:$0xff]
    %v138 = vld [vmem:[#allocation10 + $0x120] sm:$0xff]
    %v139 = vld [vmem:[#allocation10 + $0x128] sm:$0xff]
    %v140 = vld [vmem:[#allocation10 + $0x130] sm:$0xff]
    %v141 = vld [vmem:[#allocation10 + $0x138] sm:$0xff]
    %v142 = vld [vmem:[#allocation10 + $0x140] sm:$0xff]
    %v143 = vld [vmem:[#allocation10 + $0x148] sm:$0xff]
    %v144 = vld [vmem:[#allocation10 + $0x150] sm:$0xff]
    %v145 = vld [vmem:[#allocation10 + $0x158] sm:$0xff]
    %v146 = vld [vmem:[#allocation10 + $0x160] sm:$0xff]
    %v147 = vld [vmem:[#allocation10 + $0x168] sm:$0xff]
    %v148 = vld [vmem:[#allocation10 + $0x170] sm:$0xff]
    %v149 = vld [vmem:[#allocation10 + $0x178] sm:$0xff]
    %v150 = vld [vmem:[#allocation10 + $0x180] sm:$0xff]
    %v151 = vld [vmem:[#allocation10 + $0x188] sm:$0xff]
    %v152 = vld [vmem:[#allocation10 + $0x190] sm:$0xff]
    %v153 = vld [vmem:[#allocation10 + $0x198] sm:$0xff]
    %v154 = vld [vmem:[#allocation10 + $0x1a0] sm:$0xff]
    %v155 = vld [vmem:[#allocation10 + $0x1a8] sm:$0xff]
    %v156 = vld [vmem:[#allocation10 + $0x1b0] sm:$0xff]
    %v157 = vld [vmem:[#allocation10 + $0x1b8] sm:$0xff]
    %v158 = vld [vmem:[#allocation10 + $0x1c0] sm:$0xff]
    %v159 = vld [vmem:[#allocation10 + $0x1c8] sm:$0xff]
    %v160 = vld [vmem:[#allocation10 + $0x1d0] sm:$0xff]
    %v161 = vld [vmem:[#allocation10 + $0x1d8] sm:$0xff]
    %v162 = vld [vmem:[#allocation10 + $0x1e0] sm:$0xff]
    %v163 = vld [vmem:[#allocation10 + $0x1e8] sm:$0xff]
    %v164 = vld [vmem:[#allocation10 + $0x1f0] sm:$0xff]
    %v165 = vld [vmem:[#allocation10 + $0x1f8] sm:$0xff]
    %v166 = vld [vmem:[#allocation10 + $0x200] sm:$0xff]
    %v167 = vld [vmem:[#allocation10 + $0x208] sm:$0xff]
    %v168 = vld [vmem:[#allocation10 + $0x210] sm:$0xff]
    %v169 = vld [vmem:[#allocation10 + $0x218] sm:$0xff]
    %v170 = vld [vmem:[#allocation10 + $0x220] sm:$0xff]
    %v171 = vld [vmem:[#allocation10 + $0x228] sm:$0xff]
    %v172 = vld [vmem:[#allocation10 + $0x230] sm:$0xff]
    %v173 = vld [vmem:[#allocation10 + $0x238] sm:$0xff]
    %v174 = vld [vmem:[#allocation10 + $0x240] sm:$0xff]
    %v175 = vld [vmem:[#allocation10 + $0x248] sm:$0xff]
    %v176 = vld [vmem:[#allocation10 + $0x250] sm:$0xff]
    %v177 = vld [vmem:[#allocation10 + $0x258] sm:$0xff]
    %v178 = vld [vmem:[#allocation10 + $0x260] sm:$0xff]
    %v179 = vld [vmem:[#allocation10 + $0x268] sm:$0xff]
    %v180 = vld [vmem:[#allocation10 + $0x270] sm:$0xff]
    %v181 = vld [vmem:[#allocation10 + $0x278] sm:$0xff]
    %v182 = vld [vmem:[#allocation10 + $0x280] sm:$0xff]
    %v183 = vld [vmem:[#allocation10 + $0x288] sm:$0xff]
    %v184 = vld [vmem:[#allocation10 + $0x290] sm:$0xff]
    %v185 = vld [vmem:[#allocation10 + $0x298] sm:$0xff]
    %v186 = vld [vmem:[#allocation10 + $0x2a0] sm:$0xff]
    %v187 = vld [vmem:[#allocation10 + $0x2a8] sm:$0xff]
    %v188 = vld [vmem:[#allocation10 + $0x2b0] sm:$0xff]
    %v189 = vld [vmem:[#allocation10 + $0x2b8] sm:$0xff]
    %v190 = vld [vmem:[#allocation10 + $0x2c0] sm:$0xff]
    %v191 = vld [vmem:[#allocation10 + $0x2c8] sm:$0xff]
    %v192 = vld [vmem:[#allocation10 + $0x2d0] sm:$0xff]
    %v193 = vld [vmem:[#allocation10 + $0x2d8] sm:$0xff]
    %v194 = vld [vmem:[#allocation10 + $0x2e0] sm:$0xff]
    %v195 = vld [vmem:[#allocation10 + $0x2e8] sm:$0xff]
    %v196 = vld [vmem:[#allocation10 + $0x2f0] sm:$0xff]
    %v197 = vld [vmem:[#allocation10 + $0x2f8] sm:$0xff]
    %v198 = vld [vmem:[#allocation10 + $0x300] sm:$0xff]
    %v199 = vld [vmem:[#allocation10 + $0x308] sm:$0xff]
    %v200 = vld [vmem:[#allocation10 + $0x310] sm:$0xff]
    %v201 = vld [vmem:[#allocation10 + $0x318] sm:$0xff]
    %v202 = vld [vmem:[#allocation10 + $0x320] sm:$0xff]
    %v203 = vld [vmem:[#allocation10 + $0x328] sm:$0xff]
    %v204 = vld [vmem:[#allocation10 + $0x330] sm:$0xff]
    %v205 = vld [vmem:[#allocation10 + $0x338] sm:$0xff]
    %v206 = vld [vmem:[#allocation10 + $0x340] sm:$0xff]
    %v207 = vld [vmem:[#allocation10 + $0x348] sm:$0xff]
    %v208 = vld [vmem:[#allocation10 + $0x350] sm:$0xff]
    %v209 = vld [vmem:[#allocation10 + $0x358] sm:$0xff]
    %v210 = vld [vmem:[#allocation10 + $0x360] sm:$0xff]
    %v211 = vld [vmem:[#allocation10 + $0x368] sm:$0xff]
    %v212 = vld [vmem:[#allocation10 + $0x370] sm:$0xff]
    %v213 = vld [vmem:[#allocation10 + $0x378] sm:$0xff]
    %v214 = vld [vmem:[#allocation10 + $0x380] sm:$0xff]
    %v215 = vld [vmem:[#allocation10 + $0x388] sm:$0xff]
    %v216 = vld [vmem:[#allocation10 + $0x390] sm:$0xff]
    %v217 = vld [vmem:[#allocation10 + $0x398] sm:$0xff]
    %v218 = vld [vmem:[#allocation10 + $0x3a0] sm:$0xff]
    %v219 = vld [vmem:[#allocation10 + $0x3a8] sm:$0xff]
    %v220 = vld [vmem:[#allocation10 + $0x3b0] sm:$0xff]
    %v221 = vld [vmem:[#allocation10 + $0x3b8] sm:$0xff]
    %v222 = vld [vmem:[#allocation10 + $0x3c0] sm:$0xff]
    %v223 = vld [vmem:[#allocation10 + $0x3c8] sm:$0xff]
    %v224 = vld [vmem:[#allocation10 + $0x3d0] sm:$0xff]
    %v225 = vld [vmem:[#allocation10 + $0x3d8] sm:$0xff]
    %v226 = vld [vmem:[#allocation10 + $0x3e0] sm:$0xff]
    %v227 = vld [vmem:[#allocation10 + $0x3e8] sm:$0xff]
    %v228 = vld [vmem:[#allocation10 + $0x3f0] sm:$0xff]
    %v229 = vld [vmem:[#allocation10 + $0x3f8] sm:$0xff]
    %v230 = vld [vmem:[#allocation10 + $0x400] sm:$0xff]
    %v231 = vld [vmem:[#allocation10 + $0x408] sm:$0xff]
    %v232 = vld [vmem:[#allocation10 + $0x410] sm:$0xff]
    %v233 = vld [vmem:[#allocation10 + $0x418] sm:$0xff]
    %v234 = vld [vmem:[#allocation10 + $0x420] sm:$0xff]
    %v235 = vld [vmem:[#allocation10 + $0x428] sm:$0xff]
    %v236 = vld [vmem:[#allocation10 + $0x430] sm:$0xff]
    %v237 = vld [vmem:[#allocation10 + $0x438] sm:$0xff]
    %v238 = vld [vmem:[#allocation10 + $0x440] sm:$0xff]
    %v239 = vld [vmem:[#allocation10 + $0x448] sm:$0xff]
    %v240 = vld [vmem:[#allocation10 + $0x450] sm:$0xff]
    %v241 = vld [vmem:[#allocation10 + $0x458] sm:$0xff]
    %v242 = vld [vmem:[#allocation10 + $0x460] sm:$0xff]
    %v243 = vld [vmem:[#allocation10 + $0x468] sm:$0xff]
    %v244 = vld [vmem:[#allocation10 + $0x470] sm:$0xff]
    %v245 = vld [vmem:[#allocation10 + $0x478] sm:$0xff]
    %v246 = vld [vmem:[#allocation10 + $0x480] sm:$0xff]
    %v247 = vld [vmem:[#allocation10 + $0x488] sm:$0xff]
    %v248 = vld [vmem:[#allocation10 + $0x490] sm:$0xff]
    %v249 = vld [vmem:[#allocation10 + $0x498] sm:$0xff]
    %v250 = vld [vmem:[#allocation10 + $0x4a0] sm:$0xff]
    %v251 = vld [vmem:[#allocation10 + $0x4a8] sm:$0xff]
    %v252 = vld [vmem:[#allocation10 + $0x4b0] sm:$0xff]
    %v253 = vld [vmem:[#allocation10 + $0x4b8] sm:$0xff]
    %v254 = vld [vmem:[#allocation10 + $0x4c0] sm:$0xff]
    %v255 = vld [vmem:[#allocation10 + $0x4c8] sm:$0xff]
    %v256 = vld [vmem:[#allocation10 + $0x4d0] sm:$0xff]
    %v257 = vld [vmem:[#allocation10 + $0x4d8] sm:$0xff]
    %v258 = vld [vmem:[#allocation10 + $0x4e0] sm:$0xff]
    %v259 = vld [vmem:[#allocation10 + $0x4e8] sm:$0xff]
    %v260 = vld [vmem:[#allocation10 + $0x4f0] sm:$0xff]
    %v261 = vld [vmem:[#allocation10 + $0x4f8] sm:$0xff]
    %v262 = vld [vmem:[#allocation10 + $0x500] sm:$0xff]
    %v263 = vld [vmem:[#allocation10 + $0x508] sm:$0xff]
    %v264 = vld [vmem:[#allocation10 + $0x510] sm:$0xff]
    %v265 = vld [vmem:[#allocation10 + $0x518] sm:$0xff]
    %v266 = vld [vmem:[#allocation10 + $0x520] sm:$0xff]
    %v267 = vld [vmem:[#allocation10 + $0x528] sm:$0xff]
    %v268 = vld [vmem:[#allocation10 + $0x530] sm:$0xff]
    %v269 = vld [vmem:[#allocation10 + $0x538] sm:$0xff]
    %v270 = vld [vmem:[#allocation10 + $0x540] sm:$0xff]
    %v271 = vld [vmem:[#allocation10 + $0x548] sm:$0xff]
    %v272 = vld [vmem:[#allocation10 + $0x550] sm:$0xff]
    %v273 = vld [vmem:[#allocation10 + $0x558] sm:$0xff]
    %v274 = vld [vmem:[#allocation10 + $0x560] sm:$0xff]
    %v275 = vld [vmem:[#allocation10 + $0x568] sm:$0xff]
    %v276 = vld [vmem:[#allocation10 + $0x570] sm:$0xff]
    %v277 = vld [vmem:[#allocation10 + $0x578] sm:$0xff]
    %v278 = vld [vmem:[#allocation10 + $0x580] sm:$0xff]
    %v279 = vld [vmem:[#allocation10 + $0x588] sm:$0xff]
    %v280 = vld [vmem:[#allocation10 + $0x590] sm:$0xff]
    %v281 = vld [vmem:[#allocation10 + $0x598] sm:$0xff]
    %v282 = vld [vmem:[#allocation10 + $0x5a0] sm:$0xff]
    %v283 = vld [vmem:[#allocation10 + $0x5a8] sm:$0xff]
    %v284 = vld [vmem:[#allocation10 + $0x5b0] sm:$0xff]
    %v285 = vld [vmem:[#allocation10 + $0x5b8] sm:$0xff]
    %v286 = vld [vmem:[#allocation10 + $0x5c0] sm:$0xff]
    %v287 = vld [vmem:[#allocation10 + $0x5c8] sm:$0xff]
    %v288 = vld [vmem:[#allocation10 + $0x5d0] sm:$0xff]
    %v289 = vld [vmem:[#allocation10 + $0x5d8] sm:$0xff]
    %v290 = vld [vmem:[#allocation10 + $0x5e0] sm:$0xff]
    %v291 = vld [vmem:[#allocation10 + $0x5e8] sm:$0xff]
    %v292 = vld [vmem:[#allocation10 + $0x5f0] sm:$0xff]
    %v293 = vld [vmem:[#allocation10 + $0x5f8] sm:$0xff]
    %v294 = vld [vmem:[#allocation10 + $0x600] sm:$0xff]
    %v295 = vld [vmem:[#allocation10 + $0x608] sm:$0xff]
    %v296 = vld [vmem:[#allocation10 + $0x610] sm:$0xff]
    %v297 = vld [vmem:[#allocation10 + $0x618] sm:$0xff]
    %v298 = vld [vmem:[#allocation10 + $0x620] sm:$0xff]
    %v299 = vld [vmem:[#allocation10 + $0x628] sm:$0xff]
    %v300 = vld [vmem:[#allocation10 + $0x630] sm:$0xff]
    %v301 = vld [vmem:[#allocation10 + $0x638] sm:$0xff]
    %v302 = vld [vmem:[#allocation10 + $0x640] sm:$0xff]
    %v303 = vld [vmem:[#allocation10 + $0x648] sm:$0xff]
    %v304 = vld [vmem:[#allocation10 + $0x650] sm:$0xff]
    %v305 = vld [vmem:[#allocation10 + $0x658] sm:$0xff]
    %v306 = vld [vmem:[#allocation10 + $0x660] sm:$0xff]
    %v307 = vld [vmem:[#allocation10 + $0x668] sm:$0xff]
    %v308 = vld [vmem:[#allocation10 + $0x670] sm:$0xff]
    %v309 = vld [vmem:[#allocation10 + $0x678] sm:$0xff]
    %v310 = vld [vmem:[#allocation10 + $0x680] sm:$0xff]
    %v311 = vld [vmem:[#allocation10 + $0x688] sm:$0xff]
    %v312 = vld [vmem:[#allocation10 + $0x690] sm:$0xff]
    %v313 = vld [vmem:[#allocation10 + $0x698] sm:$0xff]
    %v314 = vld [vmem:[#allocation10 + $0x6a0] sm:$0xff]
    %v315 = vld [vmem:[#allocation10 + $0x6a8] sm:$0xff]
    %v316 = vld [vmem:[#allocation10 + $0x6b0] sm:$0xff]
    %v317 = vld [vmem:[#allocation10 + $0x6b8] sm:$0xff]
    %v318 = vld [vmem:[#allocation10 + $0x6c0] sm:$0xff]
    %v319 = vld [vmem:[#allocation10 + $0x6c8] sm:$0xff]
    %v320 = vld [vmem:[#allocation10 + $0x6d0] sm:$0xff]
    %v321 = vld [vmem:[#allocation10 + $0x6d8] sm:$0xff]
    %v322 = vld [vmem:[#allocation10 + $0x6e0] sm:$0xff]
    %v323 = vld [vmem:[#allocation10 + $0x6e8] sm:$0xff]
    %v324 = vld [vmem:[#allocation10 + $0x6f0] sm:$0xff]
    %v325 = vld [vmem:[#allocation10 + $0x6f8] sm:$0xff]
    %v326 = vld [vmem:[#allocation10 + $0x700] sm:$0xff]
    %v327 = vld [vmem:[#allocation10 + $0x708] sm:$0xff]
    %v328 = vld [vmem:[#allocation10 + $0x710] sm:$0xff]
    %v329 = vld [vmem:[#allocation10 + $0x718] sm:$0xff]
    %v330 = vld [vmem:[#allocation10 + $0x720] sm:$0xff]
    %v331 = vld [vmem:[#allocation10 + $0x728] sm:$0xff]
    %v332 = vld [vmem:[#allocation10 + $0x730] sm:$0xff]
    %v333 = vld [vmem:[#allocation10 + $0x738] sm:$0xff]
    %v334 = vld [vmem:[#allocation10 + $0x740] sm:$0xff]
    %v335 = vld [vmem:[#allocation10 + $0x748] sm:$0xff]
    %v336 = vld [vmem:[#allocation10 + $0x750] sm:$0xff]
    %v337 = vld [vmem:[#allocation10 + $0x758] sm:$0xff]
    %v338 = vld [vmem:[#allocation10 + $0x760] sm:$0xff]
    %v339 = vld [vmem:[#allocation10 + $0x768] sm:$0xff]
    %v340 = vld [vmem:[#allocation10 + $0x770] sm:$0xff]
    %v341 = vld [vmem:[#allocation10 + $0x778] sm:$0xff]
    %v342 = vld [vmem:[#allocation10 + $0x780] sm:$0xff]
    %v343 = vld [vmem:[#allocation10 + $0x788] sm:$0xff]
    %v344 = vld [vmem:[#allocation10 + $0x790] sm:$0xff]
    %v345 = vld [vmem:[#allocation10 + $0x798] sm:$0xff]
    %v346 = vld [vmem:[#allocation10 + $0x7a0] sm:$0xff]
    %v347 = vld [vmem:[#allocation10 + $0x7a8] sm:$0xff]
    %v348 = vld [vmem:[#allocation10 + $0x7b0] sm:$0xff]
    %v349 = vld [vmem:[#allocation10 + $0x7b8] sm:$0xff]
    %v350 = vld [vmem:[#allocation10 + $0x7c0] sm:$0xff]
    %v351 = vld [vmem:[#allocation10 + $0x7c8] sm:$0xff]
    %v352 = vld [vmem:[#allocation10 + $0x7d0] sm:$0xff]
    %v353 = vld [vmem:[#allocation10 + $0x7d8] sm:$0xff]
    %v354 = vld [vmem:[#allocation10 + $0x7e0] sm:$0xff]
    %v355 = vld [vmem:[#allocation10 + $0x7e8] sm:$0xff]
    %v356 = vld [vmem:[#allocation10 + $0x7f0] sm:$0xff]
    %v357 = vld [vmem:[#allocation10 + $0x7f8] sm:$0xff]
    %v358 = vld [vmem:[%s3] sm:$0xf]
    %v360 = vlaneseq
    %v361 = vshrl.u32 %v360, 7
    %v362 = vsub.s32 0, %v361
    %v363 = vrot.slane %v358, %v362
    %v364 = vlaneseq
    %v365 = vshrl.u32 %v364, 7
    %v366 = vsub.s32 1, %v365
    %v367 = vrot.slane %v358, %v366
    %v368 = vlaneseq
    %v369 = vshrl.u32 %v368, 7
    %v370 = vsub.s32 2, %v369
    %v371 = vrot.slane %v358, %v370
    %v372 = vlaneseq
    %v373 = vshrl.u32 %v372, 7
    %v374 = vsub.s32 3, %v373
    %v375 = vrot.slane %v358, %v374
    %v636 = vunpack.c.l.b16 %v102
    %v637 = vunpack.c.h.b16 %v102
    %v638 = vunpack.c.l.b16 %v103
    %v639 = vunpack.c.h.b16 %v103
    %v640 = vunpack.c.l.b16 %v104
    %v641 = vunpack.c.h.b16 %v104
    %v642 = vunpack.c.l.b16 %v105
    %v643 = vunpack.c.h.b16 %v105
    %v644 = vunpack.c.l.b16 %v106
    %v645 = vunpack.c.h.b16 %v106
    %v646 = vunpack.c.l.b16 %v107
    %v647 = vunpack.c.h.b16 %v107
    %v648 = vunpack.c.l.b16 %v108
    %v649 = vunpack.c.h.b16 %v108
    %v650 = vunpack.c.l.b16 %v109
    %v651 = vunpack.c.h.b16 %v109
    %v652 = vunpack.c.l.b16 %v110
    %v653 = vunpack.c.h.b16 %v110
    %v654 = vunpack.c.l.b16 %v111
    %v655 = vunpack.c.h.b16 %v111
    %v656 = vunpack.c.l.b16 %v112
    %v657 = vunpack.c.h.b16 %v112
    %v658 = vunpack.c.l.b16 %v113
    %v659 = vunpack.c.h.b16 %v113
    %v660 = vunpack.c.l.b16 %v114
    %v661 = vunpack.c.h.b16 %v114
    %v662 = vunpack.c.l.b16 %v115
    %v663 = vunpack.c.h.b16 %v115
    %v664 = vunpack.c.l.b16 %v116
    %v665 = vunpack.c.h.b16 %v116
    %v666 = vunpack.c.l.b16 %v117
    %v667 = vunpack.c.h.b16 %v117
    %v668 = vunpack.c.l.b16 %v118
    %v669 = vunpack.c.h.b16 %v118
    %v670 = vunpack.c.l.b16 %v119
    %v671 = vunpack.c.h.b16 %v119
    %v672 = vunpack.c.l.b16 %v120
    %v673 = vunpack.c.h.b16 %v120
    %v674 = vunpack.c.l.b16 %v121
    %v675 = vunpack.c.h.b16 %v121
    %v676 = vunpack.c.l.b16 %v122
    %v677 = vunpack.c.h.b16 %v122
    %v678 = vunpack.c.l.b16 %v123
    %v679 = vunpack.c.h.b16 %v123
    %v680 = vunpack.c.l.b16 %v124
    %v681 = vunpack.c.h.b16 %v124
    %v682 = vunpack.c.l.b16 %v125
    %v683 = vunpack.c.h.b16 %v125
    %v684 = vunpack.c.l.b16 %v126
    %v685 = vunpack.c.h.b16 %v126
    %v686 = vunpack.c.l.b16 %v127
    %v687 = vunpack.c.h.b16 %v127
    %v688 = vunpack.c.l.b16 %v128
    %v689 = vunpack.c.h.b16 %v128
    %v690 = vunpack.c.l.b16 %v129
    %v691 = vunpack.c.h.b16 %v129
    %v692 = vunpack.c.l.b16 %v130
    %v693 = vunpack.c.h.b16 %v130
    %v694 = vunpack.c.l.b16 %v131
    %v695 = vunpack.c.h.b16 %v131
    %v696 = vunpack.c.l.b16 %v132
    %v697 = vunpack.c.h.b16 %v132
    %v698 = vunpack.c.l.b16 %v133
    %v699 = vunpack.c.h.b16 %v133
    %v700 = vunpack.c.l.b16 %v134
    %v701 = vunpack.c.h.b16 %v134
    %v702 = vunpack.c.l.b16 %v135
    %v703 = vunpack.c.h.b16 %v135
    %v704 = vunpack.c.l.b16 %v136
    %v705 = vunpack.c.h.b16 %v136
    %v706 = vunpack.c.l.b16 %v137
    %v707 = vunpack.c.h.b16 %v137
    %v708 = vunpack.c.l.b16 %v138
    %v709 = vunpack.c.h.b16 %v138
    %v710 = vunpack.c.l.b16 %v139
    %v711 = vunpack.c.h.b16 %v139
    %v712 = vunpack.c.l.b16 %v140
    %v713 = vunpack.c.h.b16 %v140
    %v714 = vunpack.c.l.b16 %v141
    %v715 = vunpack.c.h.b16 %v141
    %v716 = vunpack.c.l.b16 %v142
    %v717 = vunpack.c.h.b16 %v142
    %v718 = vunpack.c.l.b16 %v143
    %v719 = vunpack.c.h.b16 %v143
    %v720 = vunpack.c.l.b16 %v144
    %v721 = vunpack.c.h.b16 %v144
    %v722 = vunpack.c.l.b16 %v145
    %v723 = vunpack.c.h.b16 %v145
    %v724 = vunpack.c.l.b16 %v146
    %v725 = vunpack.c.h.b16 %v146
    %v726 = vunpack.c.l.b16 %v147
    %v727 = vunpack.c.h.b16 %v147
    %v728 = vunpack.c.l.b16 %v148
    %v729 = vunpack.c.h.b16 %v148
    %v730 = vunpack.c.l.b16 %v149
    %v731 = vunpack.c.h.b16 %v149
    %v732 = vunpack.c.l.b16 %v150
    %v733 = vunpack.c.h.b16 %v150
    %v734 = vunpack.c.l.b16 %v151
    %v735 = vunpack.c.h.b16 %v151
    %v736 = vunpack.c.l.b16 %v152
    %v737 = vunpack.c.h.b16 %v152
    %v738 = vunpack.c.l.b16 %v153
    %v739 = vunpack.c.h.b16 %v153
    %v740 = vunpack.c.l.b16 %v154
    %v741 = vunpack.c.h.b16 %v154
    %v742 = vunpack.c.l.b16 %v155
    %v743 = vunpack.c.h.b16 %v155
    %v744 = vunpack.c.l.b16 %v156
    %v745 = vunpack.c.h.b16 %v156
    %v746 = vunpack.c.l.b16 %v157
    %v747 = vunpack.c.h.b16 %v157
    %v748 = vunpack.c.l.b16 %v158
    %v749 = vunpack.c.h.b16 %v158
    %v750 = vunpack.c.l.b16 %v159
    %v751 = vunpack.c.h.b16 %v159
    %v752 = vunpack.c.l.b16 %v160
    %v753 = vunpack.c.h.b16 %v160
    %v754 = vunpack.c.l.b16 %v161
    %v755 = vunpack.c.h.b16 %v161
    %v756 = vunpack.c.l.b16 %v162
    %v757 = vunpack.c.h.b16 %v162
    %v758 = vunpack.c.l.b16 %v163
    %v759 = vunpack.c.h.b16 %v163
    %v760 = vunpack.c.l.b16 %v164
    %v761 = vunpack.c.h.b16 %v164
    %v762 = vunpack.c.l.b16 %v165
    %v763 = vunpack.c.h.b16 %v165
    %v764 = vunpack.c.l.b16 %v166
    %v765 = vunpack.c.h.b16 %v166
    %v766 = vunpack.c.l.b16 %v167
    %v767 = vunpack.c.h.b16 %v167
    %v768 = vunpack.c.l.b16 %v168
    %v769 = vunpack.c.h.b16 %v168
    %v770 = vunpack.c.l.b16 %v169
    %v771 = vunpack.c.h.b16 %v169
    %v772 = vunpack.c.l.b16 %v170
    %v773 = vunpack.c.h.b16 %v170
    %v774 = vunpack.c.l.b16 %v171
    %v775 = vunpack.c.h.b16 %v171
    %v776 = vunpack.c.l.b16 %v172
    %v777 = vunpack.c.h.b16 %v172
    %v778 = vunpack.c.l.b16 %v173
    %v779 = vunpack.c.h.b16 %v173
    %v780 = vunpack.c.l.b16 %v174
    %v781 = vunpack.c.h.b16 %v174
    %v782 = vunpack.c.l.b16 %v175
    %v783 = vunpack.c.h.b16 %v175
    %v784 = vunpack.c.l.b16 %v176
    %v785 = vunpack.c.h.b16 %v176
    %v786 = vunpack.c.l.b16 %v177
    %v787 = vunpack.c.h.b16 %v177
    %v788 = vunpack.c.l.b16 %v178
    %v789 = vunpack.c.h.b16 %v178
    %v790 = vunpack.c.l.b16 %v179
    %v791 = vunpack.c.h.b16 %v179
    %v792 = vunpack.c.l.b16 %v180
    %v793 = vunpack.c.h.b16 %v180
    %v794 = vunpack.c.l.b16 %v181
    %v795 = vunpack.c.h.b16 %v181
    %v796 = vunpack.c.l.b16 %v182
    %v797 = vunpack.c.h.b16 %v182
    %v798 = vunpack.c.l.b16 %v183
    %v799 = vunpack.c.h.b16 %v183
    %v800 = vunpack.c.l.b16 %v184
    %v801 = vunpack.c.h.b16 %v184
    %v802 = vunpack.c.l.b16 %v185
    %v803 = vunpack.c.h.b16 %v185
    %v804 = vunpack.c.l.b16 %v186
    %v805 = vunpack.c.h.b16 %v186
    %v806 = vunpack.c.l.b16 %v187
    %v807 = vunpack.c.h.b16 %v187
    %v808 = vunpack.c.l.b16 %v188
    %v809 = vunpack.c.h.b16 %v188
    %v810 = vunpack.c.l.b16 %v189
    %v811 = vunpack.c.h.b16 %v189
    %v812 = vunpack.c.l.b16 %v190
    %v813 = vunpack.c.h.b16 %v190
    %v814 = vunpack.c.l.b16 %v191
    %v815 = vunpack.c.h.b16 %v191
    %v816 = vunpack.c.l.b16 %v192
    %v817 = vunpack.c.h.b16 %v192
    %v818 = vunpack.c.l.b16 %v193
    %v819 = vunpack.c.h.b16 %v193
    %v820 = vunpack.c.l.b16 %v194
    %v821 = vunpack.c.h.b16 %v194
    %v822 = vunpack.c.l.b16 %v195
    %v823 = vunpack.c.h.b16 %v195
    %v824 = vunpack.c.l.b16 %v196
    %v825 = vunpack.c.h.b16 %v196
    %v826 = vunpack.c.l.b16 %v197
    %v827 = vunpack.c.h.b16 %v197
    %v828 = vunpack.c.l.b16 %v198
    %v829 = vunpack.c.h.b16 %v198
    %v830 = vunpack.c.l.b16 %v199
    %v831 = vunpack.c.h.b16 %v199
    %v832 = vunpack.c.l.b16 %v200
    %v833 = vunpack.c.h.b16 %v200
    %v834 = vunpack.c.l.b16 %v201
    %v835 = vunpack.c.h.b16 %v201
    %v836 = vunpack.c.l.b16 %v202
    %v837 = vunpack.c.h.b16 %v202
    %v838 = vunpack.c.l.b16 %v203
    %v839 = vunpack.c.h.b16 %v203
    %v840 = vunpack.c.l.b16 %v204
    %v841 = vunpack.c.h.b16 %v204
    %v842 = vunpack.c.l.b16 %v205
    %v843 = vunpack.c.h.b16 %v205
    %v844 = vunpack.c.l.b16 %v206
    %v845 = vunpack.c.h.b16 %v206
    %v846 = vunpack.c.l.b16 %v207
    %v847 = vunpack.c.h.b16 %v207
    %v848 = vunpack.c.l.b16 %v208
    %v849 = vunpack.c.h.b16 %v208
    %v850 = vunpack.c.l.b16 %v209
    %v851 = vunpack.c.h.b16 %v209
    %v852 = vunpack.c.l.b16 %v210
    %v853 = vunpack.c.h.b16 %v210
    %v854 = vunpack.c.l.b16 %v211
    %v855 = vunpack.c.h.b16 %v211
    %v856 = vunpack.c.l.b16 %v212
    %v857 = vunpack.c.h.b16 %v212
    %v858 = vunpack.c.l.b16 %v213
    %v859 = vunpack.c.h.b16 %v213
    %v860 = vunpack.c.l.b16 %v214
    %v861 = vunpack.c.h.b16 %v214
    %v862 = vunpack.c.l.b16 %v215
    %v863 = vunpack.c.h.b16 %v215
    %v864 = vunpack.c.l.b16 %v216
    %v865 = vunpack.c.h.b16 %v216
    %v866 = vunpack.c.l.b16 %v217
    %v867 = vunpack.c.h.b16 %v217
    %v868 = vunpack.c.l.b16 %v218
    %v869 = vunpack.c.h.b16 %v218
    %v870 = vunpack.c.l.b16 %v219
    %v871 = vunpack.c.h.b16 %v219
    %v872 = vunpack.c.l.b16 %v220
    %v873 = vunpack.c.h.b16 %v220
    %v874 = vunpack.c.l.b16 %v221
    %v875 = vunpack.c.h.b16 %v221
    %v876 = vunpack.c.l.b16 %v222
    %v877 = vunpack.c.h.b16 %v222
    %v878 = vunpack.c.l.b16 %v223
    %v879 = vunpack.c.h.b16 %v223
    %v880 = vunpack.c.l.b16 %v224
    %v881 = vunpack.c.h.b16 %v224
    %v882 = vunpack.c.l.b16 %v225
    %v883 = vunpack.c.h.b16 %v225
    %v884 = vunpack.c.l.b16 %v226
    %v885 = vunpack.c.h.b16 %v226
    %v886 = vunpack.c.l.b16 %v227
    %v887 = vunpack.c.h.b16 %v227
    %v888 = vunpack.c.l.b16 %v228
    %v889 = vunpack.c.h.b16 %v228
    %v890 = vunpack.c.l.b16 %v229
    %v891 = vunpack.c.h.b16 %v229
    %v892 = vunpack.c.l.b16 %v230
    %v893 = vunpack.c.h.b16 %v230
    %v894 = vunpack.c.l.b16 %v231
    %v895 = vunpack.c.h.b16 %v231
    %v896 = vunpack.c.l.b16 %v232
    %v897 = vunpack.c.h.b16 %v232
    %v898 = vunpack.c.l.b16 %v233
    %v899 = vunpack.c.h.b16 %v233
    %v900 = vunpack.c.l.b16 %v234
    %v901 = vunpack.c.h.b16 %v234
    %v902 = vunpack.c.l.b16 %v235
    %v903 = vunpack.c.h.b16 %v235
    %v904 = vunpack.c.l.b16 %v236
    %v905 = vunpack.c.h.b16 %v236
    %v906 = vunpack.c.l.b16 %v237
    %v907 = vunpack.c.h.b16 %v237
    %v908 = vunpack.c.l.b16 %v238
    %v909 = vunpack.c.h.b16 %v238
    %v910 = vunpack.c.l.b16 %v239
    %v911 = vunpack.c.h.b16 %v239
    %v912 = vunpack.c.l.b16 %v240
    %v913 = vunpack.c.h.b16 %v240
    %v914 = vunpack.c.l.b16 %v241
    %v915 = vunpack.c.h.b16 %v241
    %v916 = vunpack.c.l.b16 %v242
    %v917 = vunpack.c.h.b16 %v242
    %v918 = vunpack.c.l.b16 %v243
    %v919 = vunpack.c.h.b16 %v243
    %v920 = vunpack.c.l.b16 %v244
    %v921 = vunpack.c.h.b16 %v244
    %v922 = vunpack.c.l.b16 %v245
    %v923 = vunpack.c.h.b16 %v245
    %v924 = vunpack.c.l.b16 %v246
    %v925 = vunpack.c.h.b16 %v246
    %v926 = vunpack.c.l.b16 %v247
    %v927 = vunpack.c.h.b16 %v247
    %v928 = vunpack.c.l.b16 %v248
    %v929 = vunpack.c.h.b16 %v248
    %v930 = vunpack.c.l.b16 %v249
    %v931 = vunpack.c.h.b16 %v249
    %v932 = vunpack.c.l.b16 %v250
    %v933 = vunpack.c.h.b16 %v250
    %v934 = vunpack.c.l.b16 %v251
    %v935 = vunpack.c.h.b16 %v251
    %v936 = vunpack.c.l.b16 %v252
    %v937 = vunpack.c.h.b16 %v252
    %v938 = vunpack.c.l.b16 %v253
    %v939 = vunpack.c.h.b16 %v253
    %v940 = vunpack.c.l.b16 %v254
    %v941 = vunpack.c.h.b16 %v254
    %v942 = vunpack.c.l.b16 %v255
    %v943 = vunpack.c.h.b16 %v255
    %v944 = vunpack.c.l.b16 %v256
    %v945 = vunpack.c.h.b16 %v256
    %v946 = vunpack.c.l.b16 %v257
    %v947 = vunpack.c.h.b16 %v257
    %v948 = vunpack.c.l.b16 %v258
    %v949 = vunpack.c.h.b16 %v258
    %v950 = vunpack.c.l.b16 %v259
    %v951 = vunpack.c.h.b16 %v259
    %v952 = vunpack.c.l.b16 %v260
    %v953 = vunpack.c.h.b16 %v260
    %v954 = vunpack.c.l.b16 %v261
    %v955 = vunpack.c.h.b16 %v261
    %v956 = vunpack.c.l.b16 %v262
    %v957 = vunpack.c.h.b16 %v262
    %v958 = vunpack.c.l.b16 %v263
    %v959 = vunpack.c.h.b16 %v263
    %v960 = vunpack.c.l.b16 %v264
    %v961 = vunpack.c.h.b16 %v264
    %v962 = vunpack.c.l.b16 %v265
    %v963 = vunpack.c.h.b16 %v265
    %v964 = vunpack.c.l.b16 %v266
    %v965 = vunpack.c.h.b16 %v266
    %v966 = vunpack.c.l.b16 %v267
    %v967 = vunpack.c.h.b16 %v267
    %v968 = vunpack.c.l.b16 %v268
    %v969 = vunpack.c.h.b16 %v268
    %v970 = vunpack.c.l.b16 %v269
    %v971 = vunpack.c.h.b16 %v269
    %v972 = vunpack.c.l.b16 %v270
    %v973 = vunpack.c.h.b16 %v270
    %v974 = vunpack.c.l.b16 %v271
    %v975 = vunpack.c.h.b16 %v271
    %v976 = vunpack.c.l.b16 %v272
    %v977 = vunpack.c.h.b16 %v272
    %v978 = vunpack.c.l.b16 %v273
    %v979 = vunpack.c.h.b16 %v273
    %v980 = vunpack.c.l.b16 %v274
    %v981 = vunpack.c.h.b16 %v274
    %v982 = vunpack.c.l.b16 %v275
    %v983 = vunpack.c.h.b16 %v275
    %v984 = vunpack.c.l.b16 %v276
    %v985 = vunpack.c.h.b16 %v276
    %v986 = vunpack.c.l.b16 %v277
    %v987 = vunpack.c.h.b16 %v277
    %v988 = vunpack.c.l.b16 %v278
    %v989 = vunpack.c.h.b16 %v278
    %v990 = vunpack.c.l.b16 %v279
    %v991 = vunpack.c.h.b16 %v279
    %v992 = vunpack.c.l.b16 %v280
    %v993 = vunpack.c.h.b16 %v280
    %v994 = vunpack.c.l.b16 %v281
    %v995 = vunpack.c.h.b16 %v281
    %v996 = vunpack.c.l.b16 %v282
    %v997 = vunpack.c.h.b16 %v282
    %v998 = vunpack.c.l.b16 %v283
    %v999 = vunpack.c.h.b16 %v283
    %v1000 = vunpack.c.l.b16 %v284
    %v1001 = vunpack.c.h.b16 %v284
    %v1002 = vunpack.c.l.b16 %v285
    %v1003 = vunpack.c.h.b16 %v285
    %v1004 = vunpack.c.l.b16 %v286
    %v1005 = vunpack.c.h.b16 %v286
    %v1006 = vunpack.c.l.b16 %v287
    %v1007 = vunpack.c.h.b16 %v287
    %v1008 = vunpack.c.l.b16 %v288
    %v1009 = vunpack.c.h.b16 %v288
    %v1010 = vunpack.c.l.b16 %v289
    %v1011 = vunpack.c.h.b16 %v289
    %v1012 = vunpack.c.l.b16 %v290
    %v1013 = vunpack.c.h.b16 %v290
    %v1014 = vunpack.c.l.b16 %v291
    %v1015 = vunpack.c.h.b16 %v291
    %v1016 = vunpack.c.l.b16 %v292
    %v1017 = vunpack.c.h.b16 %v292
    %v1018 = vunpack.c.l.b16 %v293
    %v1019 = vunpack.c.h.b16 %v293
    %v1020 = vunpack.c.l.b16 %v294
    %v1021 = vunpack.c.h.b16 %v294
    %v1022 = vunpack.c.l.b16 %v295
    %v1023 = vunpack.c.h.b16 %v295
    %v1024 = vunpack.c.l.b16 %v296
    %v1025 = vunpack.c.h.b16 %v296
    %v1026 = vunpack.c.l.b16 %v297
    %v1027 = vunpack.c.h.b16 %v297
    %v1028 = vunpack.c.l.b16 %v298
    %v1029 = vunpack.c.h.b16 %v298
    %v1030 = vunpack.c.l.b16 %v299
    %v1031 = vunpack.c.h.b16 %v299
    %v1032 = vunpack.c.l.b16 %v300
    %v1033 = vunpack.c.h.b16 %v300
    %v1034 = vunpack.c.l.b16 %v301
    %v1035 = vunpack.c.h.b16 %v301
    %v1036 = vunpack.c.l.b16 %v302
    %v1037 = vunpack.c.h.b16 %v302
    %v1038 = vunpack.c.l.b16 %v303
    %v1039 = vunpack.c.h.b16 %v303
    %v1040 = vunpack.c.l.b16 %v304
    %v1041 = vunpack.c.h.b16 %v304
    %v1042 = vunpack.c.l.b16 %v305
    %v1043 = vunpack.c.h.b16 %v305
    %v1044 = vunpack.c.l.b16 %v306
    %v1045 = vunpack.c.h.b16 %v306
    %v1046 = vunpack.c.l.b16 %v307
    %v1047 = vunpack.c.h.b16 %v307
    %v1048 = vunpack.c.l.b16 %v308
    %v1049 = vunpack.c.h.b16 %v308
    %v1050 = vunpack.c.l.b16 %v309
    %v1051 = vunpack.c.h.b16 %v309
    %v1052 = vunpack.c.l.b16 %v310
    %v1053 = vunpack.c.h.b16 %v310
    %v1054 = vunpack.c.l.b16 %v311
    %v1055 = vunpack.c.h.b16 %v311
    %v1056 = vunpack.c.l.b16 %v312
    %v1057 = vunpack.c.h.b16 %v312
    %v1058 = vunpack.c.l.b16 %v313
    %v1059 = vunpack.c.h.b16 %v313
    %v1060 = vunpack.c.l.b16 %v314
    %v1061 = vunpack.c.h.b16 %v314
    %v1062 = vunpack.c.l.b16 %v315
    %v1063 = vunpack.c.h.b16 %v315
    %v1064 = vunpack.c.l.b16 %v316
    %v1065 = vunpack.c.h.b16 %v316
    %v1066 = vunpack.c.l.b16 %v317
    %v1067 = vunpack.c.h.b16 %v317
    %v1068 = vunpack.c.l.b16 %v318
    %v1069 = vunpack.c.h.b16 %v318
    %v1070 = vunpack.c.l.b16 %v319
    %v1071 = vunpack.c.h.b16 %v319
    %v1072 = vunpack.c.l.b16 %v320
    %v1073 = vunpack.c.h.b16 %v320
    %v1074 = vunpack.c.l.b16 %v321
    %v1075 = vunpack.c.h.b16 %v321
    %v1076 = vunpack.c.l.b16 %v322
    %v1077 = vunpack.c.h.b16 %v322
    %v1078 = vunpack.c.l.b16 %v323
    %v1079 = vunpack.c.h.b16 %v323
    %v1080 = vunpack.c.l.b16 %v324
    %v1081 = vunpack.c.h.b16 %v324
    %v1082 = vunpack.c.l.b16 %v325
    %v1083 = vunpack.c.h.b16 %v325
    %v1084 = vunpack.c.l.b16 %v326
    %v1085 = vunpack.c.h.b16 %v326
    %v1086 = vunpack.c.l.b16 %v327
    %v1087 = vunpack.c.h.b16 %v327
    %v1088 = vunpack.c.l.b16 %v328
    %v1089 = vunpack.c.h.b16 %v328
    %v1090 = vunpack.c.l.b16 %v329
    %v1091 = vunpack.c.h.b16 %v329
    %v1092 = vunpack.c.l.b16 %v330
    %v1093 = vunpack.c.h.b16 %v330
    %v1094 = vunpack.c.l.b16 %v331
    %v1095 = vunpack.c.h.b16 %v331
    %v1096 = vunpack.c.l.b16 %v332
    %v1097 = vunpack.c.h.b16 %v332
    %v1098 = vunpack.c.l.b16 %v333
    %v1099 = vunpack.c.h.b16 %v333
    %v1100 = vunpack.c.l.b16 %v334
    %v1101 = vunpack.c.h.b16 %v334
    %v1102 = vunpack.c.l.b16 %v335
    %v1103 = vunpack.c.h.b16 %v335
    %v1104 = vunpack.c.l.b16 %v336
    %v1105 = vunpack.c.h.b16 %v336
    %v1106 = vunpack.c.l.b16 %v337
    %v1107 = vunpack.c.h.b16 %v337
    %v1108 = vunpack.c.l.b16 %v338
    %v1109 = vunpack.c.h.b16 %v338
    %v1110 = vunpack.c.l.b16 %v339
    %v1111 = vunpack.c.h.b16 %v339
    %v1112 = vunpack.c.l.b16 %v340
    %v1113 = vunpack.c.h.b16 %v340
    %v1114 = vunpack.c.l.b16 %v341
    %v1115 = vunpack.c.h.b16 %v341
    %v1116 = vunpack.c.l.b16 %v342
    %v1117 = vunpack.c.h.b16 %v342
    %v1118 = vunpack.c.l.b16 %v343
    %v1119 = vunpack.c.h.b16 %v343
    %v1120 = vunpack.c.l.b16 %v344
    %v1121 = vunpack.c.h.b16 %v344
    %v1122 = vunpack.c.l.b16 %v345
    %v1123 = vunpack.c.h.b16 %v345
    %v1124 = vunpack.c.l.b16 %v346
    %v1125 = vunpack.c.h.b16 %v346
    %v1126 = vunpack.c.l.b16 %v347
    %v1127 = vunpack.c.h.b16 %v347
    %v1128 = vunpack.c.l.b16 %v348
    %v1129 = vunpack.c.h.b16 %v348
    %v1130 = vunpack.c.l.b16 %v349
    %v1131 = vunpack.c.h.b16 %v349
    %v1132 = vunpack.c.l.b16 %v350
    %v1133 = vunpack.c.h.b16 %v350
    %v1134 = vunpack.c.l.b16 %v351
    %v1135 = vunpack.c.h.b16 %v351
    %v1136 = vunpack.c.l.b16 %v352
    %v1137 = vunpack.c.h.b16 %v352
    %v1138 = vunpack.c.l.b16 %v353
    %v1139 = vunpack.c.h.b16 %v353
    %v1140 = vunpack.c.l.b16 %v354
    %v1141 = vunpack.c.h.b16 %v354
    %v1142 = vunpack.c.l.b16 %v355
    %v1143 = vunpack.c.h.b16 %v355
    %v1144 = vunpack.c.l.b16 %v356
    %v1145 = vunpack.c.h.b16 %v356
    %v1146 = vunpack.c.l.b16 %v357
    %v1147 = vunpack.c.h.b16 %v357
    %v1148 = vpack.c.b16 %v640, %v636
    %v1149 = vpack.c.b16 %v641, %v637
    %v1150 = vpack.c.b16 %v642, %v638
    %v1151 = vpack.c.b16 %v643, %v639
    %v1152 = vpack.c.b16 %v648, %v644
    %v1153 = vpack.c.b16 %v649, %v645
    %v1154 = vpack.c.b16 %v650, %v646
    %v1155 = vpack.c.b16 %v651, %v647
    %v1156 = vpack.c.b16 %v656, %v652
    %v1157 = vpack.c.b16 %v657, %v653
    %v1158 = vpack.c.b16 %v658, %v654
    %v1159 = vpack.c.b16 %v659, %v655
    %v1160 = vpack.c.b16 %v664, %v660
    %v1161 = vpack.c.b16 %v665, %v661
    %v1162 = vpack.c.b16 %v666, %v662
    %v1163 = vpack.c.b16 %v667, %v663
    %v1164 = vpack.c.b16 %v672, %v668
    %v1165 = vpack.c.b16 %v673, %v669
    %v1166 = vpack.c.b16 %v674, %v670
    %v1167 = vpack.c.b16 %v675, %v671
    %v1168 = vpack.c.b16 %v680, %v676
    %v1169 = vpack.c.b16 %v681, %v677
    %v1170 = vpack.c.b16 %v682, %v678
    %v1171 = vpack.c.b16 %v683, %v679
    %v1172 = vpack.c.b16 %v688, %v684
    %v1173 = vpack.c.b16 %v689, %v685
    %v1174 = vpack.c.b16 %v690, %v686
    %v1175 = vpack.c.b16 %v691, %v687
    %v1176 = vpack.c.b16 %v696, %v692
    %v1177 = vpack.c.b16 %v697, %v693
    %v1178 = vpack.c.b16 %v698, %v694
    %v1179 = vpack.c.b16 %v699, %v695
    %v1180 = vpack.c.b16 %v704, %v700
    %v1181 = vpack.c.b16 %v705, %v701
    %v1182 = vpack.c.b16 %v706, %v702
    %v1183 = vpack.c.b16 %v707, %v703
    %v1184 = vpack.c.b16 %v712, %v708
    %v1185 = vpack.c.b16 %v713, %v709
    %v1186 = vpack.c.b16 %v714, %v710
    %v1187 = vpack.c.b16 %v715, %v711
    %v1188 = vpack.c.b16 %v720, %v716
    %v1189 = vpack.c.b16 %v721, %v717
    %v1190 = vpack.c.b16 %v722, %v718
    %v1191 = vpack.c.b16 %v723, %v719
    %v1192 = vpack.c.b16 %v728, %v724
    %v1193 = vpack.c.b16 %v729, %v725
    %v1194 = vpack.c.b16 %v730, %v726
    %v1195 = vpack.c.b16 %v731, %v727
    %v1196 = vpack.c.b16 %v736, %v732
    %v1197 = vpack.c.b16 %v737, %v733
    %v1198 = vpack.c.b16 %v738, %v734
    %v1199 = vpack.c.b16 %v739, %v735
    %v1200 = vpack.c.b16 %v744, %v740
    %v1201 = vpack.c.b16 %v745, %v741
    %v1202 = vpack.c.b16 %v746, %v742
    %v1203 = vpack.c.b16 %v747, %v743
    %v1204 = vpack.c.b16 %v752, %v748
    %v1205 = vpack.c.b16 %v753, %v749
    %v1206 = vpack.c.b16 %v754, %v750
    %v1207 = vpack.c.b16 %v755, %v751
    %v1208 = vpack.c.b16 %v760, %v756
    %v1209 = vpack.c.b16 %v761, %v757
    %v1210 = vpack.c.b16 %v762, %v758
    %v1211 = vpack.c.b16 %v763, %v759
    %v1212 = vpack.c.b16 %v768, %v764
    %v1213 = vpack.c.b16 %v769, %v765
    %v1214 = vpack.c.b16 %v770, %v766
    %v1215 = vpack.c.b16 %v771, %v767
    %v1216 = vpack.c.b16 %v776, %v772
    %v1217 = vpack.c.b16 %v777, %v773
    %v1218 = vpack.c.b16 %v778, %v774
    %v1219 = vpack.c.b16 %v779, %v775
    %v1220 = vpack.c.b16 %v784, %v780
    %v1221 = vpack.c.b16 %v785, %v781
    %v1222 = vpack.c.b16 %v786, %v782
    %v1223 = vpack.c.b16 %v787, %v783
    %v1224 = vpack.c.b16 %v792, %v788
    %v1225 = vpack.c.b16 %v793, %v789
    %v1226 = vpack.c.b16 %v794, %v790
    %v1227 = vpack.c.b16 %v795, %v791
    %v1228 = vpack.c.b16 %v800, %v796
    %v1229 = vpack.c.b16 %v801, %v797
    %v1230 = vpack.c.b16 %v802, %v798
    %v1231 = vpack.c.b16 %v803, %v799
    %v1232 = vpack.c.b16 %v808, %v804
    %v1233 = vpack.c.b16 %v809, %v805
    %v1234 = vpack.c.b16 %v810, %v806
    %v1235 = vpack.c.b16 %v811, %v807
    %v1236 = vpack.c.b16 %v816, %v812
    %v1237 = vpack.c.b16 %v817, %v813
    %v1238 = vpack.c.b16 %v818, %v814
    %v1239 = vpack.c.b16 %v819, %v815
    %v1240 = vpack.c.b16 %v824, %v820
    %v1241 = vpack.c.b16 %v825, %v821
    %v1242 = vpack.c.b16 %v826, %v822
    %v1243 = vpack.c.b16 %v827, %v823
    %v1244 = vpack.c.b16 %v832, %v828
    %v1245 = vpack.c.b16 %v833, %v829
    %v1246 = vpack.c.b16 %v834, %v830
    %v1247 = vpack.c.b16 %v835, %v831
    %v1248 = vpack.c.b16 %v840, %v836
    %v1249 = vpack.c.b16 %v841, %v837
    %v1250 = vpack.c.b16 %v842, %v838
    %v1251 = vpack.c.b16 %v843, %v839
    %v1252 = vpack.c.b16 %v848, %v844
    %v1253 = vpack.c.b16 %v849, %v845
    %v1254 = vpack.c.b16 %v850, %v846
    %v1255 = vpack.c.b16 %v851, %v847
    %v1256 = vpack.c.b16 %v856, %v852
    %v1257 = vpack.c.b16 %v857, %v853
    %v1258 = vpack.c.b16 %v858, %v854
    %v1259 = vpack.c.b16 %v859, %v855
    %v1260 = vpack.c.b16 %v864, %v860
    %v1261 = vpack.c.b16 %v865, %v861
    %v1262 = vpack.c.b16 %v866, %v862
    %v1263 = vpack.c.b16 %v867, %v863
    %v1264 = vpack.c.b16 %v872, %v868
    %v1265 = vpack.c.b16 %v873, %v869
    %v1266 = vpack.c.b16 %v874, %v870
    %v1267 = vpack.c.b16 %v875, %v871
    %v1268 = vpack.c.b16 %v880, %v876
    %v1269 = vpack.c.b16 %v881, %v877
    %v1270 = vpack.c.b16 %v882, %v878
    %v1271 = vpack.c.b16 %v883, %v879
    %v1272 = vpack.c.b16 %v888, %v884
    %v1273 = vpack.c.b16 %v889, %v885
    %v1274 = vpack.c.b16 %v890, %v886
    %v1275 = vpack.c.b16 %v891, %v887
    %v1276 = vpack.c.b16 %v896, %v892
    %v1277 = vpack.c.b16 %v897, %v893
    %v1278 = vpack.c.b16 %v898, %v894
    %v1279 = vpack.c.b16 %v899, %v895
    %v1280 = vpack.c.b16 %v904, %v900
    %v1281 = vpack.c.b16 %v905, %v901
    %v1282 = vpack.c.b16 %v906, %v902
    %v1283 = vpack.c.b16 %v907, %v903
    %v1284 = vpack.c.b16 %v912, %v908
    %v1285 = vpack.c.b16 %v913, %v909
    %v1286 = vpack.c.b16 %v914, %v910
    %v1287 = vpack.c.b16 %v915, %v911
    %v1288 = vpack.c.b16 %v920, %v916
    %v1289 = vpack.c.b16 %v921, %v917
    %v1290 = vpack.c.b16 %v922, %v918
    %v1291 = vpack.c.b16 %v923, %v919
    %v1292 = vpack.c.b16 %v928, %v924
    %v1293 = vpack.c.b16 %v929, %v925
    %v1294 = vpack.c.b16 %v930, %v926
    %v1295 = vpack.c.b16 %v931, %v927
    %v1296 = vpack.c.b16 %v936, %v932
    %v1297 = vpack.c.b16 %v937, %v933
    %v1298 = vpack.c.b16 %v938, %v934
    %v1299 = vpack.c.b16 %v939, %v935
    %v1300 = vpack.c.b16 %v944, %v940
    %v1301 = vpack.c.b16 %v945, %v941
    %v1302 = vpack.c.b16 %v946, %v942
    %v1303 = vpack.c.b16 %v947, %v943
    %v1304 = vpack.c.b16 %v952, %v948
    %v1305 = vpack.c.b16 %v953, %v949
    %v1306 = vpack.c.b16 %v954, %v950
    %v1307 = vpack.c.b16 %v955, %v951
    %v1308 = vpack.c.b16 %v960, %v956
    %v1309 = vpack.c.b16 %v961, %v957
    %v1310 = vpack.c.b16 %v962, %v958
    %v1311 = vpack.c.b16 %v963, %v959
    %v1312 = vpack.c.b16 %v968, %v964
    %v1313 = vpack.c.b16 %v969, %v965
    %v1314 = vpack.c.b16 %v970, %v966
    %v1315 = vpack.c.b16 %v971, %v967
    %v1316 = vpack.c.b16 %v976, %v972
    %v1317 = vpack.c.b16 %v977, %v973
    %v1318 = vpack.c.b16 %v978, %v974
    %v1319 = vpack.c.b16 %v979, %v975
    %v1320 = vpack.c.b16 %v984, %v980
    %v1321 = vpack.c.b16 %v985, %v981
    %v1322 = vpack.c.b16 %v986, %v982
    %v1323 = vpack.c.b16 %v987, %v983
    %v1324 = vpack.c.b16 %v992, %v988
    %v1325 = vpack.c.b16 %v993, %v989
    %v1326 = vpack.c.b16 %v994, %v990
    %v1327 = vpack.c.b16 %v995, %v991
    %v1328 = vpack.c.b16 %v1000, %v996
    %v1329 = vpack.c.b16 %v1001, %v997
    %v1330 = vpack.c.b16 %v1002, %v998
    %v1331 = vpack.c.b16 %v1003, %v999
    %v1332 = vpack.c.b16 %v1008, %v1004
    %v1333 = vpack.c.b16 %v1009, %v1005
    %v1334 = vpack.c.b16 %v1010, %v1006
    %v1335 = vpack.c.b16 %v1011, %v1007
    %v1336 = vpack.c.b16 %v1016, %v1012
    %v1337 = vpack.c.b16 %v1017, %v1013
    %v1338 = vpack.c.b16 %v1018, %v1014
    %v1339 = vpack.c.b16 %v1019, %v1015
    %v1340 = vpack.c.b16 %v1024, %v1020
    %v1341 = vpack.c.b16 %v1025, %v1021
    %v1342 = vpack.c.b16 %v1026, %v1022
    %v1343 = vpack.c.b16 %v1027, %v1023
    %v1344 = vpack.c.b16 %v1032, %v1028
    %v1345 = vpack.c.b16 %v1033, %v1029
    %v1346 = vpack.c.b16 %v1034, %v1030
    %v1347 = vpack.c.b16 %v1035, %v1031
    %v1348 = vpack.c.b16 %v1040, %v1036
    %v1349 = vpack.c.b16 %v1041, %v1037
    %v1350 = vpack.c.b16 %v1042, %v1038
    %v1351 = vpack.c.b16 %v1043, %v1039
    %v1352 = vpack.c.b16 %v1048, %v1044
    %v1353 = vpack.c.b16 %v1049, %v1045
    %v1354 = vpack.c.b16 %v1050, %v1046
    %v1355 = vpack.c.b16 %v1051, %v1047
    %v1356 = vpack.c.b16 %v1056, %v1052
    %v1357 = vpack.c.b16 %v1057, %v1053
    %v1358 = vpack.c.b16 %v1058, %v1054
    %v1359 = vpack.c.b16 %v1059, %v1055
    %v1360 = vpack.c.b16 %v1064, %v1060
    %v1361 = vpack.c.b16 %v1065, %v1061
    %v1362 = vpack.c.b16 %v1066, %v1062
    %v1363 = vpack.c.b16 %v1067, %v1063
    %v1364 = vpack.c.b16 %v1072, %v1068
    %v1365 = vpack.c.b16 %v1073, %v1069
    %v1366 = vpack.c.b16 %v1074, %v1070
    %v1367 = vpack.c.b16 %v1075, %v1071
    %v1368 = vpack.c.b16 %v1080, %v1076
    %v1369 = vpack.c.b16 %v1081, %v1077
    %v1370 = vpack.c.b16 %v1082, %v1078
    %v1371 = vpack.c.b16 %v1083, %v1079
    %v1372 = vpack.c.b16 %v1088, %v1084
    %v1373 = vpack.c.b16 %v1089, %v1085
    %v1374 = vpack.c.b16 %v1090, %v1086
    %v1375 = vpack.c.b16 %v1091, %v1087
    %v1376 = vpack.c.b16 %v1096, %v1092
    %v1377 = vpack.c.b16 %v1097, %v1093
    %v1378 = vpack.c.b16 %v1098, %v1094
    %v1379 = vpack.c.b16 %v1099, %v1095
    %v1380 = vpack.c.b16 %v1104, %v1100
    %v1381 = vpack.c.b16 %v1105, %v1101
    %v1382 = vpack.c.b16 %v1106, %v1102
    %v1383 = vpack.c.b16 %v1107, %v1103
    %v1384 = vpack.c.b16 %v1112, %v1108
    %v1385 = vpack.c.b16 %v1113, %v1109
    %v1386 = vpack.c.b16 %v1114, %v1110
    %v1387 = vpack.c.b16 %v1115, %v1111
    %v1388 = vpack.c.b16 %v1120, %v1116
    %v1389 = vpack.c.b16 %v1121, %v1117
    %v1390 = vpack.c.b16 %v1122, %v1118
    %v1391 = vpack.c.b16 %v1123, %v1119
    %v1392 = vpack.c.b16 %v1128, %v1124
    %v1393 = vpack.c.b16 %v1129, %v1125
    %v1394 = vpack.c.b16 %v1130, %v1126
    %v1395 = vpack.c.b16 %v1131, %v1127
    %v1396 = vpack.c.b16 %v1136, %v1132
    %v1397 = vpack.c.b16 %v1137, %v1133
    %v1398 = vpack.c.b16 %v1138, %v1134
    %v1399 = vpack.c.b16 %v1139, %v1135
    %v1400 = vpack.c.b16 %v1144, %v1140
    %v1401 = vpack.c.b16 %v1145, %v1141
    %v1402 = vpack.c.b16 %v1146, %v1142
    %v1403 = vpack.c.b16 %v1147, %v1143
    %1660 = vmatprep.subr.bf16.mxu0 %v1149
    %1661 = vmatpush1.bf16.msra.mxu0 %v1148
    %1662 = vmatprep.subr.bf16.mxu0 %v1153
    %1663 = vmatpush1.bf16.msra.mxu0 %v1152
    %1664 = vmatprep.subr.bf16.mxu0 %v1157
    %1665 = vmatpush1.bf16.msra.mxu0 %v1156
    %1666 = vmatprep.subr.bf16.mxu0 %v1161
    %1667 = vmatpush1.bf16.msra.mxu0 %v1160
    %1668 = vmatprep.subr.bf16.mxu0 %v1165
    %1669 = vmatpush1.bf16.msra.mxu0 %v1164
    %1670 = vmatprep.subr.bf16.mxu0 %v1169
    %1671 = vmatpush1.bf16.msra.mxu0 %v1168
    %1672 = vmatprep.subr.bf16.mxu0 %v1173
    %1673 = vmatpush1.bf16.msra.mxu0 %v1172
    %1674 = vmatprep.subr.bf16.mxu0 %v1177
    %1675 = vmatpush1.bf16.msra.mxu0 %v1176
    %1676 = vmatprep.subr.bf16.mxu0 %v1181
    %1677 = vmatpush1.bf16.msra.mxu0 %v1180
    %1678 = vmatprep.subr.bf16.mxu0 %v1185
    %1679 = vmatpush1.bf16.msra.mxu0 %v1184
    %1680 = vmatprep.subr.bf16.mxu0 %v1189
    %1681 = vmatpush1.bf16.msra.mxu0 %v1188
    %1682 = vmatprep.subr.bf16.mxu0 %v1193
    %1683 = vmatpush1.bf16.msra.mxu0 %v1192
    %1684 = vmatprep.subr.bf16.mxu0 %v1197
    %1685 = vmatpush1.bf16.msra.mxu0 %v1196
    %1686 = vmatprep.subr.bf16.mxu0 %v1201
    %1687 = vmatpush1.bf16.msra.mxu0 %v1200
    %1688 = vmatprep.subr.bf16.mxu0 %v1205
    %1689 = vmatpush1.bf16.msra.mxu0 %v1204
    %1690 = vmatprep.subr.bf16.mxu0 %v1209
    %1691 = vmatpush1.bf16.msra.mxu0 %v1208
    %1692 = vmatprep.mubr.bf16.mxu0 %v95
    %1693 = vmatmul.mubr.bf16.gmra.mrb[0].mxu0 %v94
    %v1694 = vpop.f32.mrb[0].mxu0
    %v1695 = vadd.f32 %v363, %v1694
    %v1696 = vpop.f32.mrb[0].mxu0
    %v1697 = vadd.f32 %v367, %v1696
    %v1698 = vpop.f32.mrb[0].mxu0
    %v1699 = vadd.f32 %v363, %v1698
    %v1700 = vpop.f32.mrb[0].mxu0
    %v1701 = vadd.f32 %v367, %v1700
    %1702 = vdwg.mxu0
    %1703 = vmatprep.subr.bf16.mxu0 %v1213
    %1704 = vmatpush1.bf16.msra.mxu0 %v1212
    %1705 = vmatprep.subr.bf16.mxu0 %v1217
    %1706 = vmatpush1.bf16.msra.mxu0 %v1216
    %1707 = vmatprep.subr.bf16.mxu0 %v1221
    %1708 = vmatpush1.bf16.msra.mxu0 %v1220
    %1709 = vmatprep.subr.bf16.mxu0 %v1225
    %1710 = vmatpush1.bf16.msra.mxu0 %v1224
    %1711 = vmatprep.subr.bf16.mxu0 %v1229
    %1712 = vmatpush1.bf16.msra.mxu0 %v1228
    %1713 = vmatprep.subr.bf16.mxu0 %v1233
    %1714 = vmatpush1.bf16.msra.mxu0 %v1232
    %1715 = vmatprep.subr.bf16.mxu0 %v1237
    %1716 = vmatpush1.bf16.msra.mxu0 %v1236
    %1717 = vmatprep.subr.bf16.mxu0 %v1241
    %1718 = vmatpush1.bf16.msra.mxu0 %v1240
    %1719 = vmatprep.subr.bf16.mxu0 %v1245
    %1720 = vmatpush1.bf16.msra.mxu0 %v1244
    %1721 = vmatprep.subr.bf16.mxu0 %v1249
    %1722 = vmatpush1.bf16.msra.mxu0 %v1248
    %1723 = vmatprep.subr.bf16.mxu0 %v1253
    %1724 = vmatpush1.bf16.msra.mxu0 %v1252
    %1725 = vmatprep.subr.bf16.mxu0 %v1257
    %1726 = vmatpush1.bf16.msra.mxu0 %v1256
    %1727 = vmatprep.subr.bf16.mxu0 %v1261
    %1728 = vmatpush1.bf16.msra.mxu0 %v1260
    %1729 = vmatprep.subr.bf16.mxu0 %v1265
    %1730 = vmatpush1.bf16.msra.mxu0 %v1264
    %1731 = vmatprep.subr.bf16.mxu0 %v1269
    %1732 = vmatpush1.bf16.msra.mxu0 %v1268
    %1733 = vmatprep.subr.bf16.mxu0 %v1273
    %1734 = vmatpush1.bf16.msra.mxu0 %v1272
    %1735 = vmatprep.mubr.bf16.mxu0 %v97
    %1736 = vmatmul.mubr.bf16.gmra.mrb[0].mxu0 %v96
    %v1737 = vpop.f32.mrb[0].mxu0
    %v1738 = vadd.f32 %v1695, %v1737
    %v1739 = vpop.f32.mrb[0].mxu0
    %v1740 = vadd.f32 %v1697, %v1739
    %v1741 = vpop.f32.mrb[0].mxu0
    %v1742 = vadd.f32 %v1699, %v1741
    %v1743 = vpop.f32.mrb[0].mxu0
    %v1744 = vadd.f32 %v1701, %v1743
    %1745 = vdwg.mxu0
    %1746 = vmatprep.subr.bf16.mxu0 %v1277
    %1747 = vmatpush1.bf16.msra.mxu0 %v1276
    %1748 = vmatprep.subr.bf16.mxu0 %v1281
    %1749 = vmatpush1.bf16.msra.mxu0 %v1280
    %1750 = vmatprep.subr.bf16.mxu0 %v1285
    %1751 = vmatpush1.bf16.msra.mxu0 %v1284
    %1752 = vmatprep.subr.bf16.mxu0 %v1289
    %1753 = vmatpush1.bf16.msra.mxu0 %v1288
    %1754 = vmatprep.subr.bf16.mxu0 %v1293
    %1755 = vmatpush1.bf16.msra.mxu0 %v1292
    %1756 = vmatprep.subr.bf16.mxu0 %v1297
    %1757 = vmatpush1.bf16.msra.mxu0 %v1296
    %1758 = vmatprep.subr.bf16.mxu0 %v1301
    %1759 = vmatpush1.bf16.msra.mxu0 %v1300
    %1760 = vmatprep.subr.bf16.mxu0 %v1305
    %1761 = vmatpush1.bf16.msra.mxu0 %v1304
    %1762 = vmatprep.subr.bf16.mxu0 %v1309
    %1763 = vmatpush1.bf16.msra.mxu0 %v1308
    %1764 = vmatprep.subr.bf16.mxu0 %v1313
    %1765 = vmatpush1.bf16.msra.mxu0 %v1312
    %1766 = vmatprep.subr.bf16.mxu0 %v1317
    %1767 = vmatpush1.bf16.msra.mxu0 %v1316
    %1768 = vmatprep.subr.bf16.mxu0 %v1321
    %1769 = vmatpush1.bf16.msra.mxu0 %v1320
    %1770 = vmatprep.subr.bf16.mxu0 %v1325
    %1771 = vmatpush1.bf16.msra.mxu0 %v1324
    %1772 = vmatprep.subr.bf16.mxu0 %v1329
    %1773 = vmatpush1.bf16.msra.mxu0 %v1328
    %1774 = vmatprep.subr.bf16.mxu0 %v1333
    %1775 = vmatpush1.bf16.msra.mxu0 %v1332
    %1776 = vmatprep.subr.bf16.mxu0 %v1337
    %1777 = vmatpush1.bf16.msra.mxu0 %v1336
    %1778 = vmatprep.mubr.bf16.mxu0 %v99
    %1779 = vmatmul.mubr.bf16.gmra.mrb[0].mxu0 %v98
    %v1780 = vpop.f32.mrb[0].mxu0
    %v1781 = vadd.f32 %v1738, %v1780
    %v1782 = vpop.f32.mrb[0].mxu0
    %v1783 = vadd.f32 %v1740, %v1782
    %v1784 = vpop.f32.mrb[0].mxu0
    %v1785 = vadd.f32 %v1742, %v1784
    %v1786 = vpop.f32.mrb[0].mxu0
    %v1787 = vadd.f32 %v1744, %v1786
    %1788 = vdwg.mxu0
    %1789 = vmatprep.subr.bf16.mxu0 %v1341
    %1790 = vmatpush1.bf16.msra.mxu0 %v1340
    %1791 = vmatprep.subr.bf16.mxu0 %v1345
    %1792 = vmatpush1.bf16.msra.mxu0 %v1344
    %1793 = vmatprep.subr.bf16.mxu0 %v1349
    %1794 = vmatpush1.bf16.msra.mxu0 %v1348
    %1795 = vmatprep.subr.bf16.mxu0 %v1353
    %1796 = vmatpush1.bf16.msra.mxu0 %v1352
    %1797 = vmatprep.subr.bf16.mxu0 %v1357
    %1798 = vmatpush1.bf16.msra.mxu0 %v1356
    %1799 = vmatprep.subr.bf16.mxu0 %v1361
    %1800 = vmatpush1.bf16.msra.mxu0 %v1360
    %1801 = vmatprep.subr.bf16.mxu0 %v1365
    %1802 = vmatpush1.bf16.msra.mxu0 %v1364
    %1803 = vmatprep.subr.bf16.mxu0 %v1369
    %1804 = vmatpush1.bf16.msra.mxu0 %v1368
    %1805 = vmatprep.subr.bf16.mxu0 %v1373
    %1806 = vmatpush1.bf16.msra.mxu0 %v1372
    %1807 = vmatprep.subr.bf16.mxu0 %v1377
    %1808 = vmatpush1.bf16.msra.mxu0 %v1376
    %1809 = vmatprep.subr.bf16.mxu0 %v1381
    %1810 = vmatpush1.bf16.msra.mxu0 %v1380
    %1811 = vmatprep.subr.bf16.mxu0 %v1385
    %1812 = vmatpush1.bf16.msra.mxu0 %v1384
    %1813 = vmatprep.subr.bf16.mxu0 %v1389
    %1814 = vmatpush1.bf16.msra.mxu0 %v1388
    %1815 = vmatprep.subr.bf16.mxu0 %v1393
    %1816 = vmatpush1.bf16.msra.mxu0 %v1392
    %1817 = vmatprep.subr.bf16.mxu0 %v1397
    %1818 = vmatpush1.bf16.msra.mxu0 %v1396
    %1819 = vmatprep.subr.bf16.mxu0 %v1401
    %1820 = vmatpush1.bf16.msra.mxu0 %v1400
    %1821 = vmatprep.mubr.bf16.mxu0 %v101
    %1822 = vmatmul.mubr.bf16.gmra.mrb[0].mxu0 %v100
    %v1823 = vpop.f32.mrb[0].mxu0
    %v1824 = vadd.f32 %v1781, %v1823
    %v1825 = vpop.f32.mrb[0].mxu0
    %v1826 = vadd.f32 %v1783, %v1825
    %v1827 = vpop.f32.mrb[0].mxu0
    %v1828 = vadd.f32 %v1785, %v1827
    %v1829 = vpop.f32.mrb[0].mxu0
    %v1830 = vadd.f32 %v1787, %v1829
    %1831 = vdwg.mxu0
    %1832 = vmatprep.subr.bf16.mxu0 %v1151
    %1833 = vmatpush1.bf16.msra.mxu0 %v1150
    %1834 = vmatprep.subr.bf16.mxu0 %v1155
    %1835 = vmatpush1.bf16.msra.mxu0 %v1154
    %1836 = vmatprep.subr.bf16.mxu0 %v1159
    %1837 = vmatpush1.bf16.msra.mxu0 %v1158
    %1838 = vmatprep.subr.bf16.mxu0 %v1163
    %1839 = vmatpush1.bf16.msra.mxu0 %v1162
    %1840 = vmatprep.subr.bf16.mxu0 %v1167
    %1841 = vmatpush1.bf16.msra.mxu0 %v1166
    %1842 = vmatprep.subr.bf16.mxu0 %v1171
    %1843 = vmatpush1.bf16.msra.mxu0 %v1170
    %1844 = vmatprep.subr.bf16.mxu0 %v1175
    %1845 = vmatpush1.bf16.msra.mxu0 %v1174
    %1846 = vmatprep.subr.bf16.mxu0 %v1179
    %1847 = vmatpush1.bf16.msra.mxu0 %v1178
    %1848 = vmatprep.subr.bf16.mxu0 %v1183
    %1849 = vmatpush1.bf16.msra.mxu0 %v1182
    %1850 = vmatprep.subr.bf16.mxu0 %v1187
    %1851 = vmatpush1.bf16.msra.mxu0 %v1186
    %1852 = vmatprep.subr.bf16.mxu0 %v1191
    %1853 = vmatpush1.bf16.msra.mxu0 %v1190
    %1854 = vmatprep.subr.bf16.mxu0 %v1195
    %1855 = vmatpush1.bf16.msra.mxu0 %v1194
    %1856 = vmatprep.subr.bf16.mxu0 %v1199
    %1857 = vmatpush1.bf16.msra.mxu0 %v1198
    %1858 = vmatprep.subr.bf16.mxu0 %v1203
    %1859 = vmatpush1.bf16.msra.mxu0 %v1202
    %1860 = vmatprep.subr.bf16.mxu0 %v1207
    %1861 = vmatpush1.bf16.msra.mxu0 %v1206
    %1862 = vmatprep.subr.bf16.mxu0 %v1211
    %1863 = vmatpush1.bf16.msra.mxu0 %v1210
    %1864 = vmatprep.mubr.bf16.mxu0 %v95
    %1865 = vmatmul.mubr.bf16.gmra.mrb[0].mxu0 %v94
    %v1866 = vpop.f32.mrb[0].mxu0
    %v1867 = vadd.f32 %v371, %v1866
    %v1868 = vpop.f32.mrb[0].mxu0
    %v1869 = vadd.f32 %v375, %v1868
    %v1870 = vpop.f32.mrb[0].mxu0
    %v1871 = vadd.f32 %v371, %v1870
    %v1872 = vpop.f32.mrb[0].mxu0
    %v1873 = vadd.f32 %v375, %v1872
    %1874 = vdwg.mxu0
    %1875 = vmatprep.subr.bf16.mxu0 %v1215
    %1876 = vmatpush1.bf16.msra.mxu0 %v1214
    %1877 = vmatprep.subr.bf16.mxu0 %v1219
    %1878 = vmatpush1.bf16.msra.mxu0 %v1218
    %1879 = vmatprep.subr.bf16.mxu0 %v1223
    %1880 = vmatpush1.bf16.msra.mxu0 %v1222
    %1881 = vmatprep.subr.bf16.mxu0 %v1227
    %1882 = vmatpush1.bf16.msra.mxu0 %v1226
    %1883 = vmatprep.subr.bf16.mxu0 %v1231
    %1884 = vmatpush1.bf16.msra.mxu0 %v1230
    %1885 = vmatprep.subr.bf16.mxu0 %v1235
    %1886 = vmatpush1.bf16.msra.mxu0 %v1234
    %1887 = vmatprep.subr.bf16.mxu0 %v1239
    %1888 = vmatpush1.bf16.msra.mxu0 %v1238
    %1889 = vmatprep.subr.bf16.mxu0 %v1243
    %1890 = vmatpush1.bf16.msra.mxu0 %v1242
    %1891 = vmatprep.subr.bf16.mxu0 %v1247
    %1892 = vmatpush1.bf16.msra.mxu0 %v1246
    %1893 = vmatprep.subr.bf16.mxu0 %v1251
    %1894 = vmatpush1.bf16.msra.mxu0 %v1250
    %1895 = vmatprep.subr.bf16.mxu0 %v1255
    %1896 = vmatpush1.bf16.msra.mxu0 %v1254
    %1897 = vmatprep.subr.bf16.mxu0 %v1259
    %1898 = vmatpush1.bf16.msra.mxu0 %v1258
    %1899 = vmatprep.subr.bf16.mxu0 %v1263
    %1900 = vmatpush1.bf16.msra.mxu0 %v1262
    %1901 = vmatprep.subr.bf16.mxu0 %v1267
    %1902 = vmatpush1.bf16.msra.mxu0 %v1266
    %1903 = vmatprep.subr.bf16.mxu0 %v1271
    %1904 = vmatpush1.bf16.msra.mxu0 %v1270
    %1905 = vmatprep.subr.bf16.mxu0 %v1275
    %1906 = vmatpush1.bf16.msra.mxu0 %v1274
    %1907 = vmatprep.mubr.bf16.mxu0 %v97
    %1908 = vmatmul.mubr.bf16.gmra.mrb[0].mxu0 %v96
    %v1909 = vpop.f32.mrb[0].mxu0
    %v1910 = vadd.f32 %v1867, %v1909
    %v1911 = vpop.f32.mrb[0].mxu0
    %v1912 = vadd.f32 %v1869, %v1911
    %v1913 = vpop.f32.mrb[0].mxu0
    %v1914 = vadd.f32 %v1871, %v1913
    %v1915 = vpop.f32.mrb[0].mxu0
    %v1916 = vadd.f32 %v1873, %v1915
    %1917 = vdwg.mxu0
    %1918 = vmatprep.subr.bf16.mxu0 %v1279
    %1919 = vmatpush1.bf16.msra.mxu0 %v1278
    %1920 = vmatprep.subr.bf16.mxu0 %v1283
    %1921 = vmatpush1.bf16.msra.mxu0 %v1282
    %1922 = vmatprep.subr.bf16.mxu0 %v1287
    %1923 = vmatpush1.bf16.msra.mxu0 %v1286
    %1924 = vmatprep.subr.bf16.mxu0 %v1291
    %1925 = vmatpush1.bf16.msra.mxu0 %v1290
    %1926 = vmatprep.subr.bf16.mxu0 %v1295
    %1927 = vmatpush1.bf16.msra.mxu0 %v1294
    %1928 = vmatprep.subr.bf16.mxu0 %v1299
    %1929 = vmatpush1.bf16.msra.mxu0 %v1298
    %1930 = vmatprep.subr.bf16.mxu0 %v1303
    %1931 = vmatpush1.bf16.msra.mxu0 %v1302
    %1932 = vmatprep.subr.bf16.mxu0 %v1307
    %1933 = vmatpush1.bf16.msra.mxu0 %v1306
    %1934 = vmatprep.subr.bf16.mxu0 %v1311
    %1935 = vmatpush1.bf16.msra.mxu0 %v1310
    %1936 = vmatprep.subr.bf16.mxu0 %v1315
    %1937 = vmatpush1.bf16.msra.mxu0 %v1314
    %1938 = vmatprep.subr.bf16.mxu0 %v1319
    %1939 = vmatpush1.bf16.msra.mxu0 %v1318
    %1940 = vmatprep.subr.bf16.mxu0 %v1323
    %1941 = vmatpush1.bf16.msra.mxu0 %v1322
    %1942 = vmatprep.subr.bf16.mxu0 %v1327
    %1943 = vmatpush1.bf16.msra.mxu0 %v1326
    %1944 = vmatprep.subr.bf16.mxu0 %v1331
    %1945 = vmatpush1.bf16.msra.mxu0 %v1330
    %1946 = vmatprep.subr.bf16.mxu0 %v1335
    %1947 = vmatpush1.bf16.msra.mxu0 %v1334
    %1948 = vmatprep.subr.bf16.mxu0 %v1339
    %1949 = vmatpush1.bf16.msra.mxu0 %v1338
    %1950 = vmatprep.mubr.bf16.mxu0 %v99
    %1951 = vmatmul.mubr.bf16.gmra.mrb[0].mxu0 %v98
    %v1952 = vpop.f32.mrb[0].mxu0
    %v1953 = vadd.f32 %v1910, %v1952
    %v1954 = vpop.f32.mrb[0].mxu0
    %v1955 = vadd.f32 %v1912, %v1954
    %v1956 = vpop.f32.mrb[0].mxu0
    %v1957 = vadd.f32 %v1914, %v1956
    %v1958 = vpop.f32.mrb[0].mxu0
    %v1959 = vadd.f32 %v1916, %v1958
    %1960 = vdwg.mxu0
    %1961 = vmatprep.subr.bf16.mxu0 %v1343
    %1962 = vmatpush1.bf16.msra.mxu0 %v1342
    %1963 = vmatprep.subr.bf16.mxu0 %v1347
    %1964 = vmatpush1.bf16.msra.mxu0 %v1346
    %1965 = vmatprep.subr.bf16.mxu0 %v1351
    %1966 = vmatpush1.bf16.msra.mxu0 %v1350
    %1967 = vmatprep.subr.bf16.mxu0 %v1355
    %1968 = vmatpush1.bf16.msra.mxu0 %v1354
    %1969 = vmatprep.subr.bf16.mxu0 %v1359
    %1970 = vmatpush1.bf16.msra.mxu0 %v1358
    %1971 = vmatprep.subr.bf16.mxu0 %v1363
    %1972 = vmatpush1.bf16.msra.mxu0 %v1362
    %1973 = vmatprep.subr.bf16.mxu0 %v1367
    %1974 = vmatpush1.bf16.msra.mxu0 %v1366
    %1975 = vmatprep.subr.bf16.mxu0 %v1371
    %1976 = vmatpush1.bf16.msra.mxu0 %v1370
    %1977 = vmatprep.subr.bf16.mxu0 %v1375
    %1978 = vmatpush1.bf16.msra.mxu0 %v1374
    %1979 = vmatprep.subr.bf16.mxu0 %v1379
    %1980 = vmatpush1.bf16.msra.mxu0 %v1378
    %1981 = vmatprep.subr.bf16.mxu0 %v1383
    %1982 = vmatpush1.bf16.msra.mxu0 %v1382
    %1983 = vmatprep.subr.bf16.mxu0 %v1387
    %1984 = vmatpush1.bf16.msra.mxu0 %v1386
    %1985 = vmatprep.subr.bf16.mxu0 %v1391
    %1986 = vmatpush1.bf16.msra.mxu0 %v1390
    %1987 = vmatprep.subr.bf16.mxu0 %v1395
    %1988 = vmatpush1.bf16.msra.mxu0 %v1394
    %1989 = vmatprep.subr.bf16.mxu0 %v1399
    %1990 = vmatpush1.bf16.msra.mxu0 %v1398
    %1991 = vmatprep.subr.bf16.mxu0 %v1403
    %1992 = vmatpush1.bf16.msra.mxu0 %v1402
    %1993 = vmatprep.mubr.bf16.mxu0 %v101
    %1994 = vmatmul.mubr.bf16.gmra.mrb[0].mxu0 %v100
    %v1995 = vpop.f32.mrb[0].mxu0
    %v1996 = vadd.f32 %v1953, %v1995
    %v1997 = vpop.f32.mrb[0].mxu0
    %v1998 = vadd.f32 %v1955, %v1997
    %v1999 = vpop.f32.mrb[0].mxu0
    %v2000 = vadd.f32 %v1957, %v1999
    %v2001 = vpop.f32.mrb[0].mxu0
    %v2002 = vadd.f32 %v1959, %v2001
    %2003 = vdwg.mxu0
    %v2004 = vmax.f32 %v1824, 0.0
    %v2005 = vmax.f32 %v1826, 0.0
    %v2006 = vmax.f32 %v1996, 0.0
    %v2007 = vmax.f32 %v1998, 0.0
    %v2008 = vmax.f32 %v1828, 0.0
    %v2009 = vmax.f32 %v1830, 0.0
    %v2010 = vmax.f32 %v2000, 0.0
    %v2011 = vmax.f32 %v2002, 0.0
    %s2012 = smul.u32 0, 16
    %v2013 = vlaneseq
    %v2014 = vshrl.u32 %v2013, 7
    %v2015 = vadd.s32 %v2014, 8
    %v2016 = vstv %s2012
    %v2017 = vadd.s32 %v2016, %v2014
    %v2018 = vadd.s32 %v2016, %v2015
    %v2019 = vstv %s69
    %vm2020 = vcmp.lt.s32.totalorder %v2017, %v2019
    %vm2021 = vcmp.lt.s32.totalorder %v2018, %v2019
    %v2022 = vpack.c.bf16 %v2008, %v2004
    %v2023 = vpack.c.bf16 %v2009, %v2005
    %v2024 = vpack.c.bf16 %v2010, %v2006
    %v2025 = vpack.c.bf16 %v2011, %v2007
    %v2026 = vsel %vm2020, 1, 0
    %v2027 = vsel %vm2021, 1, 0
    %vm2028 = vcmp.eq.s32.totalorder %v2026, 1
    %vm2029 = vcmp.eq.s32.totalorder %v2027, 1
    %vm2030 = vmpackc.low %vm2028, %vm2028
    %vm2031 = vmpackc.low %vm2029, %vm2029
    %v2032 = vsel %vm2030, 65537, 0
    %v2033 = vsel %vm2031, 65537, 0
    %v2034 = vunpack.c.l.b16 %v2032
    %v2035 = vunpack.c.l.b16 %v2033
    %v2036 = vpack.c.b16 %v2035, %v2034
    %vm2037 = vcmp.ne.s16.totalorder %v2036, 0
    %v2038 = vsel %vm2037, %v2022, 0
    %v2039 = vsel %vm2037, %v2023, 0
    %v2040 = vsel %vm2037, %v2024, 0
    %v2041 = vsel %vm2037, %v2025, 0
    %v2042 = vld [vmem:[%s4] sm:$0xff]
    %v2043 = vld [vmem:[%s4 + $0x8] sm:$0xff]
    %v2044 = vld [vmem:[%s4 + $0x10] sm:$0xff]
    %v2045 = vld [vmem:[%s4 + $0x18] sm:$0xff]
    %v2046 = vld [vmem:[%s4 + $0x20] sm:$0xff]
    %v2047 = vld [vmem:[%s4 + $0x28] sm:$0xff]
    %v2048 = vld [vmem:[%s4 + $0x30] sm:$0xff]
    %v2049 = vld [vmem:[%s4 + $0x38] sm:$0xff]
    %v2050 = vld [vmem:[%s4 + $0x40] sm:$0xff]
    %v2051 = vld [vmem:[%s4 + $0x48] sm:$0xff]
    %v2052 = vld [vmem:[%s4 + $0x50] sm:$0xff]
    %v2053 = vld [vmem:[%s4 + $0x58] sm:$0xff]
    %v2054 = vld [vmem:[%s4 + $0x60] sm:$0xff]
    %v2055 = vld [vmem:[%s4 + $0x68] sm:$0xff]
    %v2056 = vld [vmem:[%s4 + $0x70] sm:$0xff]
    %v2057 = vld [vmem:[%s4 + $0x78] sm:$0xff]
    %v2058 = vld [vmem:[%s4 + $0x80] sm:$0xff]
    %v2059 = vld [vmem:[%s4 + $0x88] sm:$0xff]
    %v2060 = vld [vmem:[%s4 + $0x90] sm:$0xff]
    %v2061 = vld [vmem:[%s4 + $0x98] sm:$0xff]
    %v2062 = vld [vmem:[%s4 + $0xa0] sm:$0xff]
    %v2063 = vld [vmem:[%s4 + $0xa8] sm:$0xff]
    %v2064 = vld [vmem:[%s4 + $0xb0] sm:$0xff]
    %v2065 = vld [vmem:[%s4 + $0xb8] sm:$0xff]
    %v2066 = vld [vmem:[%s4 + $0xc0] sm:$0xff]
    %v2067 = vld [vmem:[%s4 + $0xc8] sm:$0xff]
    %v2068 = vld [vmem:[%s4 + $0xd0] sm:$0xff]
    %v2069 = vld [vmem:[%s4 + $0xd8] sm:$0xff]
    %v2070 = vld [vmem:[%s4 + $0xe0] sm:$0xff]
    %v2071 = vld [vmem:[%s4 + $0xe8] sm:$0xff]
    %v2072 = vld [vmem:[%s4 + $0xf0] sm:$0xff]
    %v2073 = vld [vmem:[%s4 + $0xf8] sm:$0xff]
    %v2074 = vld [vmem:[%s5] ss:$2 sm:$0x3]
    %v2076 = vlaneseq
    %v2077 = vshrl.u32 %v2076, 7
    %v2078 = vsub.s32 0, %v2077
    %v2079 = vrot.slane %v2074, %v2078
    %v2080 = vlaneseq
    %v2081 = vshrl.u32 %v2080, 7
    %v2082 = vsub.s32 1, %v2081
    %v2083 = vrot.slane %v2074, %v2082
    %v2118 = vunpack.c.l.b16 %v2042
    %v2119 = vunpack.c.h.b16 %v2042
    %v2120 = vunpack.c.l.b16 %v2043
    %v2121 = vunpack.c.h.b16 %v2043
    %v2122 = vunpack.c.l.b16 %v2044
    %v2123 = vunpack.c.h.b16 %v2044
    %v2124 = vunpack.c.l.b16 %v2045
    %v2125 = vunpack.c.h.b16 %v2045
    %v2126 = vunpack.c.l.b16 %v2046
    %v2127 = vunpack.c.h.b16 %v2046
    %v2128 = vunpack.c.l.b16 %v2047
    %v2129 = vunpack.c.h.b16 %v2047
    %v2130 = vunpack.c.l.b16 %v2048
    %v2131 = vunpack.c.h.b16 %v2048
    %v2132 = vunpack.c.l.b16 %v2049
    %v2133 = vunpack.c.h.b16 %v2049
    %v2134 = vunpack.c.l.b16 %v2050
    %v2135 = vunpack.c.h.b16 %v2050
    %v2136 = vunpack.c.l.b16 %v2051
    %v2137 = vunpack.c.h.b16 %v2051
    %v2138 = vunpack.c.l.b16 %v2052
    %v2139 = vunpack.c.h.b16 %v2052
    %v2140 = vunpack.c.l.b16 %v2053
    %v2141 = vunpack.c.h.b16 %v2053
    %v2142 = vunpack.c.l.b16 %v2054
    %v2143 = vunpack.c.h.b16 %v2054
    %v2144 = vunpack.c.l.b16 %v2055
    %v2145 = vunpack.c.h.b16 %v2055
    %v2146 = vunpack.c.l.b16 %v2056
    %v2147 = vunpack.c.h.b16 %v2056
    %v2148 = vunpack.c.l.b16 %v2057
    %v2149 = vunpack.c.h.b16 %v2057
    %v2150 = vunpack.c.l.b16 %v2058
    %v2151 = vunpack.c.h.b16 %v2058
    %v2152 = vunpack.c.l.b16 %v2059
    %v2153 = vunpack.c.h.b16 %v2059
    %v2154 = vunpack.c.l.b16 %v2060
    %v2155 = vunpack.c.h.b16 %v2060
    %v2156 = vunpack.c.l.b16 %v2061
    %v2157 = vunpack.c.h.b16 %v2061
    %v2158 = vunpack.c.l.b16 %v2062
    %v2159 = vunpack.c.h.b16 %v2062
    %v2160 = vunpack.c.l.b16 %v2063
    %v2161 = vunpack.c.h.b16 %v2063
    %v2162 = vunpack.c.l.b16 %v2064
    %v2163 = vunpack.c.h.b16 %v2064
    %v2164 = vunpack.c.l.b16 %v2065
    %v2165 = vunpack.c.h.b16 %v2065
    %v2166 = vunpack.c.l.b16 %v2066
    %v2167 = vunpack.c.h.b16 %v2066
    %v2168 = vunpack.c.l.b16 %v2067
    %v2169 = vunpack.c.h.b16 %v2067
    %v2170 = vunpack.c.l.b16 %v2068
    %v2171 = vunpack.c.h.b16 %v2068
    %v2172 = vunpack.c.l.b16 %v2069
    %v2173 = vunpack.c.h.b16 %v2069
    %v2174 = vunpack.c.l.b16 %v2070
    %v2175 = vunpack.c.h.b16 %v2070
    %v2176 = vunpack.c.l.b16 %v2071
    %v2177 = vunpack.c.h.b16 %v2071
    %v2178 = vunpack.c.l.b16 %v2072
    %v2179 = vunpack.c.h.b16 %v2072
    %v2180 = vunpack.c.l.b16 %v2073
    %v2181 = vunpack.c.h.b16 %v2073
    %v2182 = vpack.c.b16 %v2120, %v2118
    %v2183 = vpack.c.b16 %v2121, %v2119
    %v2184 = vpack.c.b16 %v2124, %v2122
    %v2185 = vpack.c.b16 %v2125, %v2123
    %v2186 = vpack.c.b16 %v2128, %v2126
    %v2187 = vpack.c.b16 %v2129, %v2127
    %v2188 = vpack.c.b16 %v2132, %v2130
    %v2189 = vpack.c.b16 %v2133, %v2131
    %v2190 = vpack.c.b16 %v2136, %v2134
    %v2191 = vpack.c.b16 %v2137, %v2135
    %v2192 = vpack.c.b16 %v2140, %v2138
    %v2193 = vpack.c.b16 %v2141, %v2139
    %v2194 = vpack.c.b16 %v2144, %v2142
    %v2195 = vpack.c.b16 %v2145, %v2143
    %v2196 = vpack.c.b16 %v2148, %v2146
    %v2197 = vpack.c.b16 %v2149, %v2147
    %v2198 = vpack.c.b16 %v2152, %v2150
    %v2199 = vpack.c.b16 %v2153, %v2151
    %v2200 = vpack.c.b16 %v2156, %v2154
    %v2201 = vpack.c.b16 %v2157, %v2155
    %v2202 = vpack.c.b16 %v2160, %v2158
    %v2203 = vpack.c.b16 %v2161, %v2159
    %v2204 = vpack.c.b16 %v2164, %v2162
    %v2205 = vpack.c.b16 %v2165, %v2163
    %v2206 = vpack.c.b16 %v2168, %v2166
    %v2207 = vpack.c.b16 %v2169, %v2167
    %v2208 = vpack.c.b16 %v2172, %v2170
    %v2209 = vpack.c.b16 %v2173, %v2171
    %v2210 = vpack.c.b16 %v2176, %v2174
    %v2211 = vpack.c.b16 %v2177, %v2175
    %v2212 = vpack.c.b16 %v2180, %v2178
    %v2213 = vpack.c.b16 %v2181, %v2179
    %2246 = vmatprep.subr.bf16.mxu0 %v2183
    %2247 = vmatpush1.bf16.msra.mxu0 %v2182
    %2248 = vmatprep.subr.bf16.mxu0 %v2185
    %2249 = vmatpush1.bf16.msra.mxu0 %v2184
    %2250 = vmatprep.subr.bf16.mxu0 %v2187
    %2251 = vmatpush1.bf16.msra.mxu0 %v2186
    %2252 = vmatprep.subr.bf16.mxu0 %v2189
    %2253 = vmatpush1.bf16.msra.mxu0 %v2188
    %2254 = vmatprep.subr.bf16.mxu0 %v2191
    %2255 = vmatpush1.bf16.msra.mxu0 %v2190
    %2256 = vmatprep.subr.bf16.mxu0 %v2193
    %2257 = vmatpush1.bf16.msra.mxu0 %v2192
    %2258 = vmatprep.subr.bf16.mxu0 %v2195
    %2259 = vmatpush1.bf16.msra.mxu0 %v2194
    %2260 = vmatprep.subr.bf16.mxu0 %v2197
    %2261 = vmatpush1.bf16.msra.mxu0 %v2196
    %2262 = vmatprep.subr.bf16.mxu0 %v2199
    %2263 = vmatpush1.bf16.msra.mxu0 %v2198
    %2264 = vmatprep.subr.bf16.mxu0 %v2201
    %2265 = vmatpush1.bf16.msra.mxu0 %v2200
    %2266 = vmatprep.subr.bf16.mxu0 %v2203
    %2267 = vmatpush1.bf16.msra.mxu0 %v2202
    %2268 = vmatprep.subr.bf16.mxu0 %v2205
    %2269 = vmatpush1.bf16.msra.mxu0 %v2204
    %2270 = vmatprep.subr.bf16.mxu0 %v2207
    %2271 = vmatpush1.bf16.msra.mxu0 %v2206
    %2272 = vmatprep.subr.bf16.mxu0 %v2209
    %2273 = vmatpush1.bf16.msra.mxu0 %v2208
    %2274 = vmatprep.subr.bf16.mxu0 %v2211
    %2275 = vmatpush1.bf16.msra.mxu0 %v2210
    %2276 = vmatprep.subr.bf16.mxu0 %v2213
    %2277 = vmatpush1.bf16.msra.mxu0 %v2212
    %2278 = vmatprep.mubr.bf16.mxu0 %v2039
    %2279 = vmatmul.mubr.bf16.gmra.mrb[0].mxu0 %v2038
    %v2280 = vpop.f32.mrb[0].mxu0
    %v2281 = vadd.f32 %v2079, %v2280
    %v2282 = vpop.f32.mrb[0].mxu0
    %v2283 = vadd.f32 %v2083, %v2282
    %v2284 = vpop.f32.mrb[0].mxu0
    %v2285 = vadd.f32 %v2079, %v2284
    %v2286 = vpop.f32.mrb[0].mxu0
    %v2287 = vadd.f32 %v2083, %v2286
    %2288 = vdwg.mxu0
    %v2289 = vtanh.pop %v2281
    %v2290 = vtanh.pop %v2285
    %v2291 = vxor.u32 %v2283, 2147483648
    %v2292 = vxor.u32 %v2287, 2147483648
    %v2293 = vmul.f32 %v2291, 1.442695
    %v2294 = vpow.pop %v2293
    %v2295 = vmul.f32 %v2292, 1.442695
    %v2296 = vpow.pop %v2295
    %v2297 = vadd.f32 %v2294, 1.0
    %v2298 = vadd.f32 %v2296, 1.0
    %v2299 = vrcp.pop %v2297
    %v2300 = vmul.f32 1.0, %v2299
    %v2301 = vrcp.pop %v2298
    %v2302 = vmul.f32 1.0, %v2301
    %v2303 = vmul.f32 %v2289, %v2300
    %v2304 = vmul.f32 %v2290, %v2302
    %v2305 = vpack.c.bf16 %v2304, %v2303
    %s2306 = scalar_lea.vmem %s4, 256
    %v2307 = vld [vmem:[%s2306] sm:$0xff]
    %v2308 = vld [vmem:[%s2306 + $0x8] sm:$0xff]
    %v2309 = vld [vmem:[%s2306 + $0x10] sm:$0xff]
    %v2310 = vld [vmem:[%s2306 + $0x18] sm:$0xff]
    %v2311 = vld [vmem:[%s2306 + $0x20] sm:$0xff]
    %v2312 = vld [vmem:[%s2306 + $0x28] sm:$0xff]
    %v2313 = vld [vmem:[%s2306 + $0x30] sm:$0xff]
    %v2314 = vld [vmem:[%s2306 + $0x38] sm:$0xff]
    %v2315 = vld [vmem:[%s2306 + $0x40] sm:$0xff]
    %v2316 = vld [vmem:[%s2306 + $0x48] sm:$0xff]
    %v2317 = vld [vmem:[%s2306 + $0x50] sm:$0xff]
    %v2318 = vld [vmem:[%s2306 + $0x58] sm:$0xff]
    %v2319 = vld [vmem:[%s2306 + $0x60] sm:$0xff]
    %v2320 = vld [vmem:[%s2306 + $0x68] sm:$0xff]
    %v2321 = vld [vmem:[%s2306 + $0x70] sm:$0xff]
    %v2322 = vld [vmem:[%s2306 + $0x78] sm:$0xff]
    %v2323 = vld [vmem:[%s2306 + $0x80] sm:$0xff]
    %v2324 = vld [vmem:[%s2306 + $0x88] sm:$0xff]
    %v2325 = vld [vmem:[%s2306 + $0x90] sm:$0xff]
    %v2326 = vld [vmem:[%s2306 + $0x98] sm:$0xff]
    %v2327 = vld [vmem:[%s2306 + $0xa0] sm:$0xff]
    %v2328 = vld [vmem:[%s2306 + $0xa8] sm:$0xff]
    %v2329 = vld [vmem:[%s2306 + $0xb0] sm:$0xff]
    %v2330 = vld [vmem:[%s2306 + $0xb8] sm:$0xff]
    %v2331 = vld [vmem:[%s2306 + $0xc0] sm:$0xff]
    %v2332 = vld [vmem:[%s2306 + $0xc8] sm:$0xff]
    %v2333 = vld [vmem:[%s2306 + $0xd0] sm:$0xff]
    %v2334 = vld [vmem:[%s2306 + $0xd8] sm:$0xff]
    %v2335 = vld [vmem:[%s2306 + $0xe0] sm:$0xff]
    %v2336 = vld [vmem:[%s2306 + $0xe8] sm:$0xff]
    %v2337 = vld [vmem:[%s2306 + $0xf0] sm:$0xff]
    %v2338 = vld [vmem:[%s2306 + $0xf8] sm:$0xff]
    %s2339 = scalar_lea.vmem %s5, 1
    %v2340 = vld [vmem:[%s2339] ss:$2 sm:$0x3]
    %v2342 = vlaneseq
    %v2343 = vshrl.u32 %v2342, 7
    %v2344 = vsub.s32 0, %v2343
    %v2345 = vrot.slane %v2340, %v2344
    %v2346 = vlaneseq
    %v2347 = vshrl.u32 %v2346, 7
    %v2348 = vsub.s32 1, %v2347
    %v2349 = vrot.slane %v2340, %v2348
    %v2384 = vunpack.c.l.b16 %v2307
    %v2385 = vunpack.c.h.b16 %v2307
    %v2386 = vunpack.c.l.b16 %v2308
    %v2387 = vunpack.c.h.b16 %v2308
    %v2388 = vunpack.c.l.b16 %v2309
    %v2389 = vunpack.c.h.b16 %v2309
    %v2390 = vunpack.c.l.b16 %v2310
    %v2391 = vunpack.c.h.b16 %v2310
    %v2392 = vunpack.c.l.b16 %v2311
    %v2393 = vunpack.c.h.b16 %v2311
    %v2394 = vunpack.c.l.b16 %v2312
    %v2395 = vunpack.c.h.b16 %v2312
    %v2396 = vunpack.c.l.b16 %v2313
    %v2397 = vunpack.c.h.b16 %v2313
    %v2398 = vunpack.c.l.b16 %v2314
    %v2399 = vunpack.c.h.b16 %v2314
    %v2400 = vunpack.c.l.b16 %v2315
    %v2401 = vunpack.c.h.b16 %v2315
    %v2402 = vunpack.c.l.b16 %v2316
    %v2403 = vunpack.c.h.b16 %v2316
    %v2404 = vunpack.c.l.b16 %v2317
    %v2405 = vunpack.c.h.b16 %v2317
    %v2406 = vunpack.c.l.b16 %v2318
    %v2407 = vunpack.c.h.b16 %v2318
    %v2408 = vunpack.c.l.b16 %v2319
    %v2409 = vunpack.c.h.b16 %v2319
    %v2410 = vunpack.c.l.b16 %v2320
    %v2411 = vunpack.c.h.b16 %v2320
    %v2412 = vunpack.c.l.b16 %v2321
    %v2413 = vunpack.c.h.b16 %v2321
    %v2414 = vunpack.c.l.b16 %v2322
    %v2415 = vunpack.c.h.b16 %v2322
    %v2416 = vunpack.c.l.b16 %v2323
    %v2417 = vunpack.c.h.b16 %v2323
    %v2418 = vunpack.c.l.b16 %v2324
    %v2419 = vunpack.c.h.b16 %v2324
    %v2420 = vunpack.c.l.b16 %v2325
    %v2421 = vunpack.c.h.b16 %v2325
    %v2422 = vunpack.c.l.b16 %v2326
    %v2423 = vunpack.c.h.b16 %v2326
    %v2424 = vunpack.c.l.b16 %v2327
    %v2425 = vunpack.c.h.b16 %v2327
    %v2426 = vunpack.c.l.b16 %v2328
    %v2427 = vunpack.c.h.b16 %v2328
    %v2428 = vunpack.c.l.b16 %v2329
    %v2429 = vunpack.c.h.b16 %v2329
    %v2430 = vunpack.c.l.b16 %v2330
    %v2431 = vunpack.c.h.b16 %v2330
    %v2432 = vunpack.c.l.b16 %v2331
    %v2433 = vunpack.c.h.b16 %v2331
    %v2434 = vunpack.c.l.b16 %v2332
    %v2435 = vunpack.c.h.b16 %v2332
    %v2436 = vunpack.c.l.b16 %v2333
    %v2437 = vunpack.c.h.b16 %v2333
    %v2438 = vunpack.c.l.b16 %v2334
    %v2439 = vunpack.c.h.b16 %v2334
    %v2440 = vunpack.c.l.b16 %v2335
    %v2441 = vunpack.c.h.b16 %v2335
    %v2442 = vunpack.c.l.b16 %v2336
    %v2443 = vunpack.c.h.b16 %v2336
    %v2444 = vunpack.c.l.b16 %v2337
    %v2445 = vunpack.c.h.b16 %v2337
    %v2446 = vunpack.c.l.b16 %v2338
    %v2447 = vunpack.c.h.b16 %v2338
    %v2448 = vpack.c.b16 %v2386, %v2384
    %v2449 = vpack.c.b16 %v2387, %v2385
    %v2450 = vpack.c.b16 %v2390, %v2388
    %v2451 = vpack.c.b16 %v2391, %v2389
    %v2452 = vpack.c.b16 %v2394, %v2392
    %v2453 = vpack.c.b16 %v2395, %v2393
    %v2454 = vpack.c.b16 %v2398, %v2396
    %v2455 = vpack.c.b16 %v2399, %v2397
    %v2456 = vpack.c.b16 %v2402, %v2400
    %v2457 = vpack.c.b16 %v2403, %v2401
    %v2458 = vpack.c.b16 %v2406, %v2404
    %v2459 = vpack.c.b16 %v2407, %v2405
    %v2460 = vpack.c.b16 %v2410, %v2408
    %v2461 = vpack.c.b16 %v2411, %v2409
    %v2462 = vpack.c.b16 %v2414, %v2412
    %v2463 = vpack.c.b16 %v2415, %v2413
    %v2464 = vpack.c.b16 %v2418, %v2416
    %v2465 = vpack.c.b16 %v2419, %v2417
    %v2466 = vpack.c.b16 %v2422, %v2420
    %v2467 = vpack.c.b16 %v2423, %v2421
    %v2468 = vpack.c.b16 %v2426, %v2424
    %v2469 = vpack.c.b16 %v2427, %v2425
    %v2470 = vpack.c.b16 %v2430, %v2428
    %v2471 = vpack.c.b16 %v2431, %v2429
    %v2472 = vpack.c.b16 %v2434, %v2432
    %v2473 = vpack.c.b16 %v2435, %v2433
    %v2474 = vpack.c.b16 %v2438, %v2436
    %v2475 = vpack.c.b16 %v2439, %v2437
    %v2476 = vpack.c.b16 %v2442, %v2440
    %v2477 = vpack.c.b16 %v2443, %v2441
    %v2478 = vpack.c.b16 %v2446, %v2444
    %v2479 = vpack.c.b16 %v2447, %v2445
    %2512 = vmatprep.subr.bf16.mxu0 %v2449
    %2513 = vmatpush1.bf16.msra.mxu0 %v2448
    %2514 = vmatprep.subr.bf16.mxu0 %v2451
    %2515 = vmatpush1.bf16.msra.mxu0 %v2450
    %2516 = vmatprep.subr.bf16.mxu0 %v2453
    %2517 = vmatpush1.bf16.msra.mxu0 %v2452
    %2518 = vmatprep.subr.bf16.mxu0 %v2455
    %2519 = vmatpush1.bf16.msra.mxu0 %v2454
    %2520 = vmatprep.subr.bf16.mxu0 %v2457
    %2521 = vmatpush1.bf16.msra.mxu0 %v2456
    %2522 = vmatprep.subr.bf16.mxu0 %v2459
    %2523 = vmatpush1.bf16.msra.mxu0 %v2458
    %2524 = vmatprep.subr.bf16.mxu0 %v2461
    %2525 = vmatpush1.bf16.msra.mxu0 %v2460
    %2526 = vmatprep.subr.bf16.mxu0 %v2463
    %2527 = vmatpush1.bf16.msra.mxu0 %v2462
    %2528 = vmatprep.subr.bf16.mxu0 %v2465
    %2529 = vmatpush1.bf16.msra.mxu0 %v2464
    %2530 = vmatprep.subr.bf16.mxu0 %v2467
    %2531 = vmatpush1.bf16.msra.mxu0 %v2466
    %2532 = vmatprep.subr.bf16.mxu0 %v2469
    %2533 = vmatpush1.bf16.msra.mxu0 %v2468
    %2534 = vmatprep.subr.bf16.mxu0 %v2471
    %2535 = vmatpush1.bf16.msra.mxu0 %v2470
    %2536 = vmatprep.subr.bf16.mxu0 %v2473
    %2537 = vmatpush1.bf16.msra.mxu0 %v2472
    %2538 = vmatprep.subr.bf16.mxu0 %v2475
    %2539 = vmatpush1.bf16.msra.mxu0 %v2474
    %2540 = vmatprep.subr.bf16.mxu0 %v2477
    %2541 = vmatpush1.bf16.msra.mxu0 %v2476
    %2542 = vmatprep.subr.bf16.mxu0 %v2479
    %2543 = vmatpush1.bf16.msra.mxu0 %v2478
    %2544 = vmatprep.mubr.bf16.mxu0 %v2041
    %2545 = vmatmul.mubr.bf16.gmra.mrb[0].mxu0 %v2040
    %v2546 = vpop.f32.mrb[0].mxu0
    %v2547 = vadd.f32 %v2345, %v2546
    %v2548 = vpop.f32.mrb[0].mxu0
    %v2549 = vadd.f32 %v2349, %v2548
    %v2550 = vpop.f32.mrb[0].mxu0
    %v2551 = vadd.f32 %v2345, %v2550
    %v2552 = vpop.f32.mrb[0].mxu0
    %v2553 = vadd.f32 %v2349, %v2552
    %2554 = vdwg.mxu0
    %v2555 = vtanh.pop %v2547
    %v2556 = vtanh.pop %v2551
    %v2557 = vxor.u32 %v2549, 2147483648
    %v2558 = vxor.u32 %v2553, 2147483648
    %v2559 = vmul.f32 %v2557, 1.442695
    %v2560 = vpow.pop %v2559
    %v2561 = vmul.f32 %v2558, 1.442695
    %v2562 = vpow.pop %v2561
    %v2563 = vadd.f32 %v2560, 1.0
    %v2564 = vadd.f32 %v2562, 1.0
    %v2565 = vrcp.pop %v2563
    %v2566 = vmul.f32 1.0, %v2565
    %v2567 = vrcp.pop %v2564
    %v2568 = vmul.f32 1.0, %v2567
    %v2569 = vmul.f32 %v2555, %v2566
    %v2570 = vmul.f32 %v2556, %v2568
    %v2571 = vpack.c.bf16 %v2570, %v2569
    %v2572 = vld [vmem:[%s6] sm:$0x3]
    %v2573 = vld [vmem:[%s7] sm:$0x3]
    %2575 = vset.pattern.permute.xlu0 0
    %2576 = vperm.xlu0 %2575, %v2573
    %v2577 = vpop.permute.xlu0 %2576
    %v2581 = vunpack.c.l.s4 1966171168
    %v2582 = vunpack.c.0.s8 %v2581
    %v2583 = vlaneseq
    %v2584 = vshrl.u32 %v2583, 7
    %v2585 = vsub.s32 %v2582, %v2584
    %v2586 = vrot.slane %v2572, %v2585
    %v2587 = vcombine.high %v2586, %v2586
    %v2589 = vunpack.c.l.s4 1966171168
    %v2590 = vunpack.c.0.s8 %v2589
    %v2591 = vlaneseq
    %v2592 = vshrl.u32 %v2591, 7
    %v2593 = vsub.s32 %v2590, %v2592
    %v2594 = vrot.slane %v2586, %v2593
    %v2596 = vunpack.c.l.s4 1966171168
    %v2597 = vunpack.c.0.s8 %v2596
    %v2598 = vlaneseq
    %v2599 = vshrl.u32 %v2598, 7
    %v2600 = vsub.s32 %v2597, %v2599
    %v2601 = vrot.slane %v2587, %v2600
    %2604 = vmatprep.subr.bf16.mxu0 %v2571
    %2605 = vmatpush1.bf16.xpose.msra.mxu0 %v2305
    %2606 = vmatprep.subr.bf16.mxu0 0
    %2607 = vmatpush1.bf16.xpose.msra.mxu0 0
    %2608 = vmatprep.subr.bf16.mxu0 0
    %2609 = vmatpush1.bf16.xpose.msra.mxu0 0
    %2610 = vmatprep.subr.bf16.mxu0 0
    %2611 = vmatpush1.bf16.xpose.msra.mxu0 0
    %2612 = vmatprep.subr.bf16.mxu0 0
    %2613 = vmatpush1.bf16.xpose.msra.mxu0 0
    %2614 = vmatprep.subr.bf16.mxu0 0
    %2615 = vmatpush1.bf16.xpose.msra.mxu0 0
    %2616 = vmatprep.subr.bf16.mxu0 0
    %2617 = vmatpush1.bf16.xpose.msra.mxu0 0
    %2618 = vmatprep.subr.bf16.mxu0 0
    %2619 = vmatpush1.bf16.xpose.msra.mxu0 0
    %2620 = vmatprep.subr.bf16.mxu0 0
    %2621 = vmatpush1.bf16.xpose.msra.mxu0 0
    %2622 = vmatprep.subr.bf16.mxu0 0
    %2623 = vmatpush1.bf16.xpose.msra.mxu0 0
    %2624 = vmatprep.subr.bf16.mxu0 0
    %2625 = vmatpush1.bf16.xpose.msra.mxu0 0
    %2626 = vmatprep.subr.bf16.mxu0 0
    %2627 = vmatpush1.bf16.xpose.msra.mxu0 0
    %2628 = vmatprep.subr.bf16.mxu0 0
    %2629 = vmatpush1.bf16.xpose.msra.mxu0 0
    %2630 = vmatprep.subr.bf16.mxu0 0
    %2631 = vmatpush1.bf16.xpose.msra.mxu0 0
    %2632 = vmatprep.subr.bf16.mxu0 0
    %2633 = vmatpush1.bf16.xpose.msra.mxu0 0
    %2634 = vmatprep.subr.bf16.mxu0 0
    %2635 = vmatpush1.bf16.xpose.msra.mxu0 0
    %2636 = vmatprep.mubr.bf16.mxu0 %v2601
    %2637 = vmatmul.mubr.bf16.gmra.mrb[0].mxu0 %v2594
    %v2638 = vpop.f32.mrb[0].mxu0
    %v2639 = vadd.f32 %v2577, %v2638
    %v2640 = vpop.f32.mrb[0].mxu0
    %v2641 = vpop.f32.mrb[0].mxu0
    %v2642 = vpop.f32.mrb[0].mxu0
    %2643 = vdwg.mxu0
    %v2644 = vlaneseq
    %v2645 = vand.u32 %v2644, 127
    %v2646 = vadd.s32 %v2016, %v2645
    %vm2647 = vcmp.lt.s32.totalorder %v2646, %v2019
    %v2648 = vsel %vm2647, %v2639, -1e+30
    %vm2649 = vcmask 123904
    %2650 = vst.msk [vmem:[#allocation13] sm:$0x3] %vm2649, %v2648
    %v2651 = vsel %vm2649, %v2648, -inf
    %2652 = vmax.xlane.f32.xlu0 %v2651
    %v2653 = vpop.xlane.xlu0 %2652
    %v2654 = vld [vmem:[#allocation2] sm:$0x3]
    %v2655 = vmax.f32 %v2654, %v2653
    %v2656 = vsub.f32 %v2654, %v2655
    %v2657 = vmul.f32 %v2656, 1.442695
    %v2658 = vpow.pop %v2657
    %2660 = vset.pattern.permute.xlu0 0
    %2661 = vperm.xlu0 %2660, %v2655
    %v2662 = vpop.permute.xlu0 %2661
    %v2664 = vsub.f32 %v2648, %v2662
    %v2665 = vmul.f32 %v2664, 1.442695
    %v2666 = vpow.pop %v2665
    %v2667 = vld [vmem:[#allocation3] sm:$0x3]
    %v2668 = vmul.f32 %v2658, %v2667
    %v2669 = vsel %vm2649, %v2666, 0.0
    %2670 = vadd.xlane.f32.xlu0 %v2669
    %v2671 = vpop.xlane.xlu0 %2670
    %v2672 = vadd.f32 %v2668, %v2671
    %vm2673 = vcmask 1024
    %2674 = vst.msk [vmem:[#allocation3] sm:$0x3] %vm2673, %v2672
    %2675 = vst.msk [vmem:[#allocation2] sm:$0x3] %vm2673, %v2655
    %v2676 = vpack.c.bf16 %v2666, %v2666
    %vm2677 = vcmask 130048
    %v2679 = vsel %vm2677, %v2676, 0
    %2681 = vmatprep.subr.bf16.mxu0 %v2039
    %2682 = vmatpush1.bf16.msra.mxu0 %v2038
    %2683 = vmatprep.subr.bf16.mxu0 0
    %2684 = vmatpush1.bf16.msra.mxu0 0
    %2685 = vmatprep.subr.bf16.mxu0 0
    %2686 = vmatpush1.bf16.msra.mxu0 0
    %2687 = vmatprep.subr.bf16.mxu0 0
    %2688 = vmatpush1.bf16.msra.mxu0 0
    %2689 = vmatprep.subr.bf16.mxu0 0
    %2690 = vmatpush1.bf16.msra.mxu0 0
    %2691 = vmatprep.subr.bf16.mxu0 0
    %2692 = vmatpush1.bf16.msra.mxu0 0
    %2693 = vmatprep.subr.bf16.mxu0 0
    %2694 = vmatpush1.bf16.msra.mxu0 0
    %2695 = vmatprep.subr.bf16.mxu0 0
    %2696 = vmatpush1.bf16.msra.mxu0 0
    %2697 = vmatprep.subr.bf16.mxu0 0
    %2698 = vmatpush1.bf16.msra.mxu0 0
    %2699 = vmatprep.subr.bf16.mxu0 0
    %2700 = vmatpush1.bf16.msra.mxu0 0
    %2701 = vmatprep.subr.bf16.mxu0 0
    %2702 = vmatpush1.bf16.msra.mxu0 0
    %2703 = vmatprep.subr.bf16.mxu0 0
    %2704 = vmatpush1.bf16.msra.mxu0 0
    %2705 = vmatprep.subr.bf16.mxu0 0
    %2706 = vmatpush1.bf16.msra.mxu0 0
    %2707 = vmatprep.subr.bf16.mxu0 0
    %2708 = vmatpush1.bf16.msra.mxu0 0
    %2709 = vmatprep.subr.bf16.mxu0 0
    %2710 = vmatpush1.bf16.msra.mxu0 0
    %2711 = vmatprep.subr.bf16.mxu0 0
    %2712 = vmatpush1.bf16.msra.mxu0 0
    %2713 = vmatprep.mubr.bf16.mxu0 0
    %2714 = vmatmul.mubr.bf16.gmra.mrb[0].mxu0 %v2679
    %v2715 = vpop.f32.mrb[0].mxu0
    %v2716 = vadd.f32 0.0, %v2715
    %v2717 = vpop.f32.mrb[0].mxu0
    %v2718 = vadd.f32 0.0, %v2717
    %v2719 = vpop.f32.mrb[0].mxu0
    %v2720 = vpop.f32.mrb[0].mxu0
    %2721 = vdwg.mxu0
    %v2722 = vshrl.u32 %v2676, 16
    %v2725 = vsel %vm2677, %v2722, 0
    %2727 = vmatprep.subr.bf16.mxu0 %v2041
    %2728 = vmatpush1.bf16.msra.mxu0 %v2040
    %2729 = vmatprep.subr.bf16.mxu0 0
    %2730 = vmatpush1.bf16.msra.mxu0 0
    %2731 = vmatprep.subr.bf16.mxu0 0
    %2732 = vmatpush1.bf16.msra.mxu0 0
    %2733 = vmatprep.subr.bf16.mxu0 0
    %2734 = vmatpush1.bf16.msra.mxu0 0
    %2735 = vmatprep.subr.bf16.mxu0 0
    %2736 = vmatpush1.bf16.msra.mxu0 0
    %2737 = vmatprep.subr.bf16.mxu0 0
    %2738 = vmatpush1.bf16.msra.mxu0 0
    %2739 = vmatprep.subr.bf16.mxu0 0
    %2740 = vmatpush1.bf16.msra.mxu0 0
    %2741 = vmatprep.subr.bf16.mxu0 0
    %2742 = vmatpush1.bf16.msra.mxu0 0
    %2743 = vmatprep.subr.bf16.mxu0 0
    %2744 = vmatpush1.bf16.msra.mxu0 0
    %2745 = vmatprep.subr.bf16.mxu0 0
    %2746 = vmatpush1.bf16.msra.mxu0 0
    %2747 = vmatprep.subr.bf16.mxu0 0
    %2748 = vmatpush1.bf16.msra.mxu0 0
    %2749 = vmatprep.subr.bf16.mxu0 0
    %2750 = vmatpush1.bf16.msra.mxu0 0
    %2751 = vmatprep.subr.bf16.mxu0 0
    %2752 = vmatpush1.bf16.msra.mxu0 0
    %2753 = vmatprep.subr.bf16.mxu0 0
    %2754 = vmatpush1.bf16.msra.mxu0 0
    %2755 = vmatprep.subr.bf16.mxu0 0
    %2756 = vmatpush1.bf16.msra.mxu0 0
    %2757 = vmatprep.subr.bf16.mxu0 0
    %2758 = vmatpush1.bf16.msra.mxu0 0
    %2759 = vmatprep.mubr.bf16.mxu0 0
    %2760 = vmatmul.mubr.bf16.gmra.mrb[0].mxu0 %v2725
    %v2761 = vpop.f32.mrb[0].mxu0
    %v2762 = vadd.f32 0.0, %v2761
    %v2763 = vpop.f32.mrb[0].mxu0
    %v2764 = vadd.f32 0.0, %v2763
    %v2765 = vpop.f32.mrb[0].mxu0
    %v2766 = vpop.f32.mrb[0].mxu0
    %2767 = vdwg.mxu0
    %v2770 = vrot.slane %v2762, 7
    %v2771 = vrot.slane %v2764, 7
    %vm2774 = vcmask 1040384
    %v2775 = vsel %vm2774, %v2716, %v2770
    %v2776 = vsel %vm2774, %v2718, %v2771
    %v2777 = vld [vmem:[#allocation4] sm:$0xf]
    %2779 = vset.pattern.permute.xlu0 0
    %2780 = vperm.xlu0 %2779, %v2658
    %v2781 = vpop.permute.xlu0 %2780
    %v2783 = vunpack.c.l.s4 269488144
    %v2784 = vunpack.c.0.s8 %v2783
    %v2785 = vlaneseq
    %v2786 = vshrl.u32 %v2785, 7
    %v2787 = vsub.s32 %v2784, %v2786
    %v2788 = vrot.slane %v2781, %v2787
    %v2790 = vmul.f32 %v2777, %v2788
    %v2793 = vcombine.low %v2775, %v2776
    %v2795 = vunpack.c.l.s4 1983009808
    %v2796 = vunpack.c.0.s8 %v2795
    %v2797 = vlaneseq
    %v2798 = vshrl.u32 %v2797, 7
    %v2799 = vsub.s32 %v2796, %v2798
    %v2800 = vrot.slane %v2793, %v2799
    %v2802 = vadd.f32 %v2790, %v2800
    %2803 = vst [vmem:[#allocation4] sm:$0xf] %v2802
    // Predicated region
    $region50: #{tpu_custom_call.1} parent=1 // pred_check
      %p2804 = pneg %p70
    $region51: #{tpu_custom_call.1} parent=1 // pred_check_branch
      %2806 = sbr.rel (%p2804) target = $region53
    $region52: #{tpu_custom_call.1} parent=1 // pred_region
      %v2807 = vld [vmem:[#allocation3] sm:$0x3]
      %v2808 = vrcp.pop %v2807
      %v2809 = vmul.f32 1.0, %v2808
      %v2810 = vld [vmem:[#allocation4] ss:$2 sm:$0x3]
      %2812 = vset.pattern.permute.xlu0 0
      %2813 = vperm.xlu0 %2812, %v2809
      %v2814 = vpop.permute.xlu0 %2813
      %v2815 = vlaneseq
      %v2816 = vshrl.u32 %v2815, 7
      %v2817 = vsub.s32 0, %v2816
      %v2818 = vrot.slane %v2814, %v2817
      %v2820 = vmul.f32 %v2810, %v2818
      %s2821 = scalar_lea.vmem [#allocation4], 1
      %v2822 = vld [vmem:[%s2821] ss:$2 sm:$0x3]
      %v2823 = vlaneseq
      %v2824 = vshrl.u32 %v2823, 7
      %v2825 = vsub.s32 1, %v2824
      %v2826 = vrot.slane %v2814, %v2825
      %v2828 = vmul.f32 %v2822, %v2826
      %v2830 = vlaneseq
      %v2831 = vshrl.u32 %v2830, 7
      %v2832 = vsub.s32 0, %v2831
      %v2833 = vrot.slane %v2820, %v2832
      %v2834 = vlaneseq
      %v2835 = vshrl.u32 %v2834, 7
      %v2836 = vsub.s32 1, %v2835
      %v2837 = vrot.slane %v2820, %v2836
      %v2841 = vlaneseq
      %v2842 = vshrl.u32 %v2841, 7
      %v2843 = vsub.s32 0, %v2842
      %v2844 = vrot.slane %v2828, %v2843
      %v2845 = vlaneseq
      %v2846 = vshrl.u32 %v2845, 7
      %v2847 = vsub.s32 1, %v2846
      %v2848 = vrot.slane %v2828, %v2847
      %v2851 = vld [vmem:[%s8] sm:$0xff]
      %v2852 = vld [vmem:[%s8 + $0x8] sm:$0xff]
      %v2853 = vld [vmem:[%s8 + $0x10] sm:$0xff]
      %v2854 = vld [vmem:[%s8 + $0x18] sm:$0xff]
      %v2855 = vld [vmem:[%s8 + $0x20] sm:$0xff]
      %v2856 = vld [vmem:[%s8 + $0x28] sm:$0xff]
      %v2857 = vld [vmem:[%s8 + $0x30] sm:$0xff]
      %v2858 = vld [vmem:[%s8 + $0x38] sm:$0xff]
      %v2859 = vld [vmem:[%s8 + $0x40] sm:$0xff]
      %v2860 = vld [vmem:[%s8 + $0x48] sm:$0xff]
      %v2861 = vld [vmem:[%s8 + $0x50] sm:$0xff]
      %v2862 = vld [vmem:[%s8 + $0x58] sm:$0xff]
      %v2863 = vld [vmem:[%s8 + $0x60] sm:$0xff]
      %v2864 = vld [vmem:[%s8 + $0x68] sm:$0xff]
      %v2865 = vld [vmem:[%s8 + $0x70] sm:$0xff]
      %v2866 = vld [vmem:[%s8 + $0x78] sm:$0xff]
      %v2867 = vld [vmem:[%s8 + $0x80] sm:$0xff]
      %v2868 = vld [vmem:[%s8 + $0x88] sm:$0xff]
      %v2869 = vld [vmem:[%s8 + $0x90] sm:$0xff]
      %v2870 = vld [vmem:[%s8 + $0x98] sm:$0xff]
      %v2871 = vld [vmem:[%s8 + $0xa0] sm:$0xff]
      %v2872 = vld [vmem:[%s8 + $0xa8] sm:$0xff]
      %v2873 = vld [vmem:[%s8 + $0xb0] sm:$0xff]
      %v2874 = vld [vmem:[%s8 + $0xb8] sm:$0xff]
      %v2875 = vld [vmem:[%s8 + $0xc0] sm:$0xff]
      %v2876 = vld [vmem:[%s8 + $0xc8] sm:$0xff]
      %v2877 = vld [vmem:[%s8 + $0xd0] sm:$0xff]
      %v2878 = vld [vmem:[%s8 + $0xd8] sm:$0xff]
      %v2879 = vld [vmem:[%s8 + $0xe0] sm:$0xff]
      %v2880 = vld [vmem:[%s8 + $0xe8] sm:$0xff]
      %v2881 = vld [vmem:[%s8 + $0xf0] sm:$0xff]
      %v2882 = vld [vmem:[%s8 + $0xf8] sm:$0xff]
      %v2883 = vld [vmem:[%s8 + $0x100] sm:$0xff]
      %v2884 = vld [vmem:[%s8 + $0x108] sm:$0xff]
      %v2885 = vld [vmem:[%s8 + $0x110] sm:$0xff]
      %v2886 = vld [vmem:[%s8 + $0x118] sm:$0xff]
      %v2887 = vld [vmem:[%s8 + $0x120] sm:$0xff]
      %v2888 = vld [vmem:[%s8 + $0x128] sm:$0xff]
      %v2889 = vld [vmem:[%s8 + $0x130] sm:$0xff]
      %v2890 = vld [vmem:[%s8 + $0x138] sm:$0xff]
      %v2891 = vld [vmem:[%s8 + $0x140] sm:$0xff]
      %v2892 = vld [vmem:[%s8 + $0x148] sm:$0xff]
      %v2893 = vld [vmem:[%s8 + $0x150] sm:$0xff]
      %v2894 = vld [vmem:[%s8 + $0x158] sm:$0xff]
      %v2895 = vld [vmem:[%s8 + $0x160] sm:$0xff]
      %v2896 = vld [vmem:[%s8 + $0x168] sm:$0xff]
      %v2897 = vld [vmem:[%s8 + $0x170] sm:$0xff]
      %v2898 = vld [vmem:[%s8 + $0x178] sm:$0xff]
      %v2899 = vld [vmem:[%s8 + $0x180] sm:$0xff]
      %v2900 = vld [vmem:[%s8 + $0x188] sm:$0xff]
      %v2901 = vld [vmem:[%s8 + $0x190] sm:$0xff]
      %v2902 = vld [vmem:[%s8 + $0x198] sm:$0xff]
      %v2903 = vld [vmem:[%s8 + $0x1a0] sm:$0xff]
      %v2904 = vld [vmem:[%s8 + $0x1a8] sm:$0xff]
      %v2905 = vld [vmem:[%s8 + $0x1b0] sm:$0xff]
      %v2906 = vld [vmem:[%s8 + $0x1b8] sm:$0xff]
      %v2907 = vld [vmem:[%s8 + $0x1c0] sm:$0xff]
      %v2908 = vld [vmem:[%s8 + $0x1c8] sm:$0xff]
      %v2909 = vld [vmem:[%s8 + $0x1d0] sm:$0xff]
      %v2910 = vld [vmem:[%s8 + $0x1d8] sm:$0xff]
      %v2911 = vld [vmem:[%s8 + $0x1e0] sm:$0xff]
      %v2912 = vld [vmem:[%s8 + $0x1e8] sm:$0xff]
      %v2913 = vld [vmem:[%s8 + $0x1f0] sm:$0xff]
      %v2914 = vld [vmem:[%s8 + $0x1f8] sm:$0xff]
      %v2915 = vld [vmem:[%s9] sm:$0x1]
      %2916 = vmatprep.subr.mxu0 0.0
      %2917 = vmatpush1.msra.mxu0 %v2851
      %2918 = vmatprep.subr.mxu0 0.0
      %2919 = vmatpush1.msra.mxu0 %v2852
      %2920 = vmatprep.subr.mxu0 0.0
      %2921 = vmatpush1.msra.mxu0 %v2853
      %2922 = vmatprep.subr.mxu0 0.0
      %2923 = vmatpush1.msra.mxu0 %v2854
      %2924 = vmatprep.subr.mxu0 0.0
      %2925 = vmatpush1.msra.mxu0 %v2855
      %2926 = vmatprep.subr.mxu0 0.0
      %2927 = vmatpush1.msra.mxu0 %v2856
      %2928 = vmatprep.subr.mxu0 0.0
      %2929 = vmatpush1.msra.mxu0 %v2857
      %2930 = vmatprep.subr.mxu0 0.0
      %2931 = vmatpush1.msra.mxu0 %v2858
      %2932 = vmatprep.subr.mxu0 0.0
      %2933 = vmatpush1.msra.mxu0 %v2859
      %2934 = vmatprep.subr.mxu0 0.0
      %2935 = vmatpush1.msra.mxu0 %v2860
      %2936 = vmatprep.subr.mxu0 0.0
      %2937 = vmatpush1.msra.mxu0 %v2861
      %2938 = vmatprep.subr.mxu0 0.0
      %2939 = vmatpush1.msra.mxu0 %v2862
      %2940 = vmatprep.subr.mxu0 0.0
      %2941 = vmatpush1.msra.mxu0 %v2863
      %2942 = vmatprep.subr.mxu0 0.0
      %2943 = vmatpush1.msra.mxu0 %v2864
      %2944 = vmatprep.subr.mxu0 0.0
      %2945 = vmatpush1.msra.mxu0 %v2865
      %2946 = vmatprep.subr.mxu0 0.0
      %2947 = vmatpush1.msra.mxu0 %v2866
      %2948 = vmatprep.subr.mxu0 0.0
      %2949 = vmatpush1.msra.mxu0 %v2867
      %2950 = vmatprep.subr.mxu0 0.0
      %2951 = vmatpush1.msra.mxu0 %v2868
      %2952 = vmatprep.subr.mxu0 0.0
      %2953 = vmatpush1.msra.mxu0 %v2869
      %2954 = vmatprep.subr.mxu0 0.0
      %2955 = vmatpush1.msra.mxu0 %v2870
      %2956 = vmatprep.subr.mxu0 0.0
      %2957 = vmatpush1.msra.mxu0 %v2871
      %2958 = vmatprep.subr.mxu0 0.0
      %2959 = vmatpush1.msra.mxu0 %v2872
      %2960 = vmatprep.subr.mxu0 0.0
      %2961 = vmatpush1.msra.mxu0 %v2873
      %2962 = vmatprep.subr.mxu0 0.0
      %2963 = vmatpush1.msra.mxu0 %v2874
      %2964 = vmatprep.subr.mxu0 0.0
      %2965 = vmatpush1.msra.mxu0 %v2875
      %2966 = vmatprep.subr.mxu0 0.0
      %2967 = vmatpush1.msra.mxu0 %v2876
      %2968 = vmatprep.subr.mxu0 0.0
      %2969 = vmatpush1.msra.mxu0 %v2877
      %2970 = vmatprep.subr.mxu0 0.0
      %2971 = vmatpush1.msra.mxu0 %v2878
      %2972 = vmatprep.subr.mxu0 0.0
      %2973 = vmatpush1.msra.mxu0 %v2879
      %2974 = vmatprep.subr.mxu0 0.0
      %2975 = vmatpush1.msra.mxu0 %v2880
      %2976 = vmatprep.subr.mxu0 0.0
      %2977 = vmatpush1.msra.mxu0 %v2881
      %2978 = vmatprep.subr.mxu0 0.0
      %2979 = vmatpush1.msra.mxu0 %v2882
      %2980 = vmatprep.mubr.f32.mxu0 %v2837
      %2981 = vmatmul.mubr.f32.gmra.mrb[0].mxu0 %v2833
      %v2982 = vpop.f32.mrb[0].mxu0
      %v2983 = vadd.f32 %v2915, %v2982
      %v2984 = vpop.f32.mrb[0].mxu0
      %2985 = vdwg.mxu0
      %2986 = vmatprep.subr.mxu0 0.0
      %2987 = vmatpush1.msra.mxu0 %v2883
      %2988 = vmatprep.subr.mxu0 0.0
      %2989 = vmatpush1.msra.mxu0 %v2884
      %2990 = vmatprep.subr.mxu0 0.0
      %2991 = vmatpush1.msra.mxu0 %v2885
      %2992 = vmatprep.subr.mxu0 0.0
      %2993 = vmatpush1.msra.mxu0 %v2886
      %2994 = vmatprep.subr.mxu0 0.0
      %2995 = vmatpush1.msra.mxu0 %v2887
      %2996 = vmatprep.subr.mxu0 0.0
      %2997 = vmatpush1.msra.mxu0 %v2888
      %2998 = vmatprep.subr.mxu0 0.0
      %2999 = vmatpush1.msra.mxu0 %v2889
      %3000 = vmatprep.subr.mxu0 0.0
      %3001 = vmatpush1.msra.mxu0 %v2890
      %3002 = vmatprep.subr.mxu0 0.0
      %3003 = vmatpush1.msra.mxu0 %v2891
      %3004 = vmatprep.subr.mxu0 0.0
      %3005 = vmatpush1.msra.mxu0 %v2892
      %3006 = vmatprep.subr.mxu0 0.0
      %3007 = vmatpush1.msra.mxu0 %v2893
      %3008 = vmatprep.subr.mxu0 0.0
      %3009 = vmatpush1.msra.mxu0 %v2894
      %3010 = vmatprep.subr.mxu0 0.0
      %3011 = vmatpush1.msra.mxu0 %v2895
      %3012 = vmatprep.subr.mxu0 0.0
      %3013 = vmatpush1.msra.mxu0 %v2896
      %3014 = vmatprep.subr.mxu0 0.0
      %3015 = vmatpush1.msra.mxu0 %v2897
      %3016 = vmatprep.subr.mxu0 0.0
      %3017 = vmatpush1.msra.mxu0 %v2898
      %3018 = vmatprep.subr.mxu0 0.0
      %3019 = vmatpush1.msra.mxu0 %v2899
      %3020 = vmatprep.subr.mxu0 0.0
      %3021 = vmatpush1.msra.mxu0 %v2900
      %3022 = vmatprep.subr.mxu0 0.0
      %3023 = vmatpush1.msra.mxu0 %v2901
      %3024 = vmatprep.subr.mxu0 0.0
      %3025 = vmatpush1.msra.mxu0 %v2902
      %3026 = vmatprep.subr.mxu0 0.0
      %3027 = vmatpush1.msra.mxu0 %v2903
      %3028 = vmatprep.subr.mxu0 0.0
      %3029 = vmatpush1.msra.mxu0 %v2904
      %3030 = vmatprep.subr.mxu0 0.0
      %3031 = vmatpush1.msra.mxu0 %v2905
      %3032 = vmatprep.subr.mxu0 0.0
      %3033 = vmatpush1.msra.mxu0 %v2906
      %3034 = vmatprep.subr.mxu0 0.0
      %3035 = vmatpush1.msra.mxu0 %v2907
      %3036 = vmatprep.subr.mxu0 0.0
      %3037 = vmatpush1.msra.mxu0 %v2908
      %3038 = vmatprep.subr.mxu0 0.0
      %3039 = vmatpush1.msra.mxu0 %v2909
      %3040 = vmatprep.subr.mxu0 0.0
      %3041 = vmatpush1.msra.mxu0 %v2910
      %3042 = vmatprep.subr.mxu0 0.0
      %3043 = vmatpush1.msra.mxu0 %v2911
      %3044 = vmatprep.subr.mxu0 0.0
      %3045 = vmatpush1.msra.mxu0 %v2912
      %3046 = vmatprep.subr.mxu0 0.0
      %3047 = vmatpush1.msra.mxu0 %v2913
      %3048 = vmatprep.subr.mxu0 0.0
      %3049 = vmatpush1.msra.mxu0 %v2914
      %3050 = vmatprep.mubr.f32.mxu0 %v2848
      %3051 = vmatmul.mubr.f32.gmra.mrb[0].mxu0 %v2844
      %v3052 = vpop.f32.mrb[0].mxu0
      %v3053 = vadd.f32 %v2983, %v3052
      %v3054 = vpop.f32.mrb[0].mxu0
      %3055 = vdwg.mxu0
      %vm3056 = vcmask 8192
      %3057 = vst.msk [vmem:[#allocation12] sm:$0x1] %vm3056, %v3053
    $region53: #{tpu_custom_call.1} parent=1 // pred_fallthru
      _
    // Predicated region
    $region54: #{tpu_custom_call.1} parent=1 // pred_check
      _
    $region55: #{tpu_custom_call.1} parent=1 // pred_check_branch
      %3059 = sbr.rel (0) target = $region57
    $region56: #{tpu_custom_call.1} parent=1 // pred_region
      %s3061 = ssub.s32 16, 16
      %3062 = vsyncadd [#allocation9], %s3061
      %s3064 = sshll.u32 [#allocation12], 4
      %s3065 = int_to_ptr.vmem [resolvable:$true] %s3064
      %3067 = dma.vmem_to_hbm [thread:$0]  %s3065, 16, %s10, [#allocation9]
    $region57: #{tpu_custom_call.1} parent=1 // pred_fallthru
      _
    // Predicated region
    $region58: #{tpu_custom_call.1} parent=1 // pred_check
      _
    $region59: #{tpu_custom_call.1} parent=1 // pred_check_branch
      %3069 = sbr.rel (0) target = $region61
    $region60: #{tpu_custom_call.1} parent=1 // pred_region
      %s3071 = ssub.s32 32, 32
      %3072 = vsyncadd [#allocation14], %s3071
      %s3074 = sshll.u32 [#allocation13], 4
      %s3075 = int_to_ptr.vmem [resolvable:$true] %s3074
      %3077 = dma.vmem_to_hbm [thread:$0]  %s3075, 32, %s11, [#allocation14]
    $region61: #{tpu_custom_call.1} parent=1 // pred_fallthru
      _
    // Predicated region
    $region62: #{tpu_custom_call.1} parent=1 // pred_check
      _
    $region63: #{tpu_custom_call.1} parent=1 // pred_check_branch
      %3079 = sbr.rel (0) target = $region65
    $region64: #{tpu_custom_call.1} parent=1 // pred_region
      %3080 = dma.done [#allocation9], 16
    $region65: #{tpu_custom_call.1} parent=1 // pred_fallthru
      _
    // Predicated region
    $region66: #{tpu_custom_call.1} parent=1 // pred_check
      _
    $region67: #{tpu_custom_call.1} parent=1 // pred_check_branch
      %3082 = sbr.rel (0) target = $region69
    $region68: #{tpu_custom_call.1} parent=1 // pred_region
      %3083 = dma.done [#allocation14], 32
    $region69: #{tpu_custom_call.1} parent=1 // pred_fallthru
      _
    %3084 = vsyncpa [#allocation8], 1
    %3085 = vsyncpa [#allocation11], 1
    %3086 = vsyncpa [#allocation9], 1
    %3087 = vsyncpa [#allocation14], 1

</llo_original>
